<compile_context>
chip_gen: v6e
topology: v6e:2x2x1
jax: 0.10.0
libtpu: 0.0.40
codegen_flags: <defaults>
</compile_context>

<pallas_src>
import functools

import jax
import jax.numpy as jnp
from jax import lax
from jax.experimental import pallas as pl
from jax.experimental.pallas import tpu as pltpu

N_AUDIO_FEATS = 16  # synthetic value for the module-level constant

_MXU_DTYPE = jnp.bfloat16  # MXU input dtype; accumulation is always f32


def _elu(x):
    # ELU(alpha=1): x if x > 0 else exp(x) - 1 (f32 math; clamp exp arg)
    return jnp.where(x > 0, x, jnp.exp(jnp.minimum(x, 0.0)) - 1.0)


def _roll_lanes(x, shift):
    """np.roll along the lane (last) axis with a static shift (0 handled)."""
    t = x.shape[-1]
    shift = shift % t
    if shift == 0:
        return x
    return pltpu.roll(x, shift, axis=x.ndim - 1)


def _zeroeggs_kernel(x_ref, halo_ref, w0_ref, b0_ref, w1_ref, b1_ref,
                     w2_ref, b2_ref, o_ref, cols_ref, *, kernel_size):
    """One grid step == (batch element b, time tile t).  VMEM shapes:

      x_ref    : (1, Cin, Tt)        input tile, time on lanes
      halo_ref : (1, 1, Cin, 2*pad)  pad columns just left/right of this tile
                                     (edge-replicated at sequence boundaries)
      w0_ref   : (H, Cin)   bf16     layer0 1x1 conv weight
      b0_ref   : (H, 1)     f32
      w1_ref   : (O, K*H)   bf16     layer1 weight, k-major: w1f[o, k*H + h]
      b1_ref   : (O, 1)     f32
      w2_ref   : (O, O)     bf16     layer2 1x1 conv weight
      b2_ref   : (O, 1)     f32
      o_ref    : (1, O, Tt)          lane-dense output tile
      cols_ref : (K*H, Tt)  bf16     im2col scratch (VMEM)
    """
    K = kernel_size
    pad = (K - 1) // 2
    H = w0_ref.shape[0]
    x = x_ref[0].astype(_MXU_DTYPE)                       # (Cin, Tt)
    Tt = x.shape[1]

    # ---- layer0: 1x1 conv == (H,Cin)@(Cin,Tt); f32 accumulate; ELU in f32.
    h0 = _elu(jnp.dot(w0_ref[...], x, preferred_element_type=jnp.float32)
              + b0_ref[...])                              # (H, Tt) f32  (dropout: id)

    # ---- layer1: fused K-tap conv.  im2col built with XLU rolls + lane masks
    #      (no ragged (H, Tt+K-1) buffer, no lane-unaligned slices); each
    #      shifted block is stored straight into the VMEM scratch.
    if pad == 0:
        cols_ref[...] = h0.astype(_MXU_DTYPE)
    else:
        # layer0 on the halo columns (pointwise => layer0(halo of x) == halo of h0)
        hx = halo_ref[0, 0].astype(_MXU_DTYPE)            # (Cin, 2*pad)
        h0h = _elu(jnp.dot(w0_ref[...], hx, preferred_element_type=jnp.float32)
                   + b0_ref[...])                         # (H, 2*pad) f32
        # Slab with left halo at lanes [0, pad), right halo at lanes [pad, 2*pad);
        # all remaining lanes are don't-care (masked out below).
        hslab = jnp.concatenate(
            [h0h, jnp.zeros((H, Tt - 2 * pad), jnp.float32)], axis=1)  # (H, Tt)
        lane = lax.broadcasted_iota(jnp.int32, (H, Tt), 1)

        for k in range(K):
            s = k - pad                                   # tap shift in [-pad, pad]
            if s == 0:
                blk = h0
            elif s < 0:
                # blk[:, j] = h0[:, j+s] for j >= -s ; left halo for j < -s
                blk = jnp.where(lane < -s,
                                _roll_lanes(hslab, -(pad + s)),
                                _roll_lanes(h0, -s))
            else:
                # blk[:, j] = h0[:, j+s] for j < Tt-s ; right halo for j >= Tt-s
                blk = jnp.where(lane >= Tt - s,
                                _roll_lanes(hslab, Tt - s - pad),
                                _roll_lanes(h0, Tt - s))
            cols_ref[k * H:(k + 1) * H, :] = blk.astype(_MXU_DTYPE)

    h1 = _elu(jnp.dot(w1_ref[...], cols_ref[...],
                      preferred_element_type=jnp.float32) + b1_ref[...])
    h1 = h1.astype(_MXU_DTYPE)                            # (O, Tt)  (dropout: id)

    # ---- layer2: 1x1 conv; lane-dense store (Tt on lanes).
    h2 = jnp.dot(w2_ref[...], h1, preferred_element_type=jnp.float32) + b2_ref[...]
    o_ref[0] = _elu(h2).astype(o_ref.dtype)


@functools.partial(jax.jit,
                   static_argnames=("kernel_size", "t_tile", "vmem_limit_bytes"))
def zeroeggs_speech_encoder(x_ncl, params, kernel_size, t_tile=512,
                            vmem_limit_bytes=32 * 1024 * 1024):
    """x_ncl: (B, N_AUDIO_FEATS, T) in f32 or bf16 (PyTorch NCL layout).

    Returns (B, output_size, T) in x_ncl.dtype, matching the PyTorch module in
    eval mode.  `t_tile` must be a multiple of 128; raise it (and
    vmem_limit_bytes) for big tiles on v5e/v6e; keep ~512-8K and 32 MiB on v7x.
    """
    if kernel_size % 2 != 1:
        raise ValueError("'same' replicate padding implemented for odd kernel_size only")
    if t_tile % 128 != 0:
        raise ValueError("t_tile must be a multiple of 128 (lane-dense tiles)")
    w0, b0, w1f, b1, w2, b2 = params
    B, Cin, T = x_ncl.shape
    H = w0.shape[0]
    O = w2.shape[0]
    K = kernel_size
    pad = (K - 1) // 2
    hw = max(2 * pad, 1)

    # bf16 MXU inputs (single-pass MXU path); biases stay f32 (added to the f32
    # accumulator inside the kernel).
    w0 = w0.astype(_MXU_DTYPE)
    w1f = w1f.astype(_MXU_DTYPE)
    w2 = w2.astype(_MXU_DTYPE)
    b0 = b0.astype(jnp.float32)
    b1 = b1.astype(jnp.float32)
    b2 = b2.astype(jnp.float32)

    # Pad T up to a multiple of t_tile with edge replication.  Harmless for the
    # valid region (layer1 uses replicate 'same' padding; layers 0/2 are
    # pointwise) and keeps every tile lane-dense (unmasked vst).
    n_t = pl.cdiv(T, t_tile)
    Tp = n_t * t_tile
    x_p = x_ncl if Tp == T else jnp.pad(
        x_ncl, ((0, 0), (0, 0), (0, Tp - T)), mode="edge")

    # Per-tile halo columns (tiny: (B, nT, Cin, 2*pad)), edge-replicated at the
    # sequence boundaries.
    if pad > 0:
        xe = jnp.pad(x_p, ((0, 0), (0, 0), (pad, pad)), mode="edge")
        left = xe[:, :, :Tp].reshape(B, Cin, n_t, t_tile)[:, :, :, :pad]
        right = xe[:, :, 2 * pad:2 * pad + Tp].reshape(
            B, Cin, n_t, t_tile)[:, :, :, t_tile - pad:]
        halo = jnp.transpose(jnp.concatenate([left, right], axis=3), (0, 2, 1, 3))
        halo = halo.astype(x_p.dtype)
    else:
        halo = jnp.zeros((B, n_t, Cin, hw), x_p.dtype)

    out = pl.pallas_call(
        functools.partial(_zeroeggs_kernel, kernel_size=K),
        out_shape=jax.ShapeDtypeStruct((B, O, Tp), x_ncl.dtype),
        grid_spec=pltpu.PrefetchScalarGridSpec(
            num_scalar_prefetch=0,
            grid=(B, n_t),
            in_specs=[
                pl.BlockSpec((1, Cin, t_tile), lambda b, t: (b, 0, t)),
                pl.BlockSpec((1, 1, Cin, hw), lambda b, t: (b, t, 0, 0)),
                pl.BlockSpec((H, Cin), lambda b, t: (0, 0)),
                pl.BlockSpec((H, 1), lambda b, t: (0, 0)),
                pl.BlockSpec((O, K * H), lambda b, t: (0, 0)),
                pl.BlockSpec((O, 1), lambda b, t: (0, 0)),
                pl.BlockSpec((O, O), lambda b, t: (0, 0)),
                pl.BlockSpec((O, 1), lambda b, t: (0, 0)),
            ],
            out_specs=pl.BlockSpec((1, O, t_tile), lambda b, t: (b, 0, t)),
            scratch_shapes=[pltpu.VMEM((K * H, t_tile), _MXU_DTYPE)],
        ),
        compiler_params=pltpu.CompilerParams(
            dimension_semantics=("parallel", "parallel"),
            vmem_limit_bytes=vmem_limit_bytes,
        ),
    )(x_p, halo, w0, b0, w1f, b1, w2, b2)

    return out if Tp == T else out[:, :, :T]


def init_params(key, cin, hidden_size, output_size, kernel_size):
    """Deterministic synthetic weights with PyTorch Conv1d shapes, pre-packed
    into the kernel layout (channel-major, layer1 flattened k-major)."""
    k0, k1, k2, k3, k4, k5 = jax.random.split(key, 6)
    # PyTorch shapes: layer0.weight (H, Cin, 1); layer1.weight (O, H, K);
    # layer2.weight (O, O, 1); biases (H,), (O,), (O,).
    w0_t = jax.random.normal(k0, (hidden_size, cin, 1), jnp.float32) * 0.1
    b0_t = jax.random.normal(k1, (hidden_size,), jnp.float32) * 0.1
    w1_t = jax.random.normal(k2, (output_size, hidden_size, kernel_size),
                             jnp.float32) * 0.1
    b1_t = jax.random.normal(k3, (output_size,), jnp.float32) * 0.1
    w2_t = jax.random.normal(k4, (output_size, output_size, 1), jnp.float32) * 0.1
    b2_t = jax.random.normal(k5, (output_size,), jnp.float32) * 0.1

    w0 = w0_t[:, :, 0]                                           # (H, Cin)
    b0 = b0_t.reshape(hidden_size, 1)                            # (H, 1)
    # w1f[o, k*H + h] = w1_t[o, h, k]  (k-major flattening, matches im2col)
    w1f = jnp.transpose(w1_t, (0, 2, 1)).reshape(
        output_size, kernel_size * hidden_size)                  # (O, K*H)
    b1 = b1_t.reshape(output_size, 1)                            # (O, 1)
    w2 = w2_t[:, :, 0]                                           # (O, O)
    b2 = b2_t.reshape(output_size, 1)                            # (O, 1)
    return (w0, b0, w1f, b1, w2, b2)


def reference_forward(x_ncl, params, kernel_size):
    """Pure-JAX reference (replicate 'same' padding), f32 math, HIGHEST precision."""
    hp = jax.lax.Precision.HIGHEST
    w0, b0, w1f, b1, w2, b2 = [p.astype(jnp.float32) for p in params]
    x = x_ncl.astype(jnp.float32)                                # (B, Cin, T)
    T = x.shape[2]
    pad = (kernel_size - 1) // 2
    h0 = _elu(jnp.einsum("hc,bct->bht", w0, x, precision=hp) + b0)
    h0p = jnp.pad(h0, ((0, 0), (0, 0), (pad, pad)), mode="edge")
    cols = jnp.concatenate(
        [h0p[:, :, k:k + T] for k in range(kernel_size)], axis=1)  # (B, K*H, T)
    h1 = _elu(jnp.einsum("ok,bkt->bot", w1f, cols, precision=hp) + b1)
    h2 = _elu(jnp.einsum("po,bot->bpt", w2, h1, precision=hp) + b2)
    return h2                                                     # (B, O, T)


if __name__ == "__main__":
    B = 2
    hidden_size = 32
    output_size = 32
    kernel_size = 5            # "adapt for fps=10 to set kernel_size=5"
    t_tile = 128               # small tile so the demo exercises a (B, nT) grid

    key = jax.random.PRNGKey(0)
    kx, kx2, kp = jax.random.split(key, 3)
    params = init_params(kp, N_AUDIO_FEATS, hidden_size, output_size, kernel_size)

    # NOTE: dropout layers are identity in inference mode (no RNG state reproduced).

    # --- f32 I/O, T a multiple of the tile: grid (2, 3), cross-tile halos ---
    T = 384
    x = jax.random.normal(kx, (B, N_AUDIO_FEATS, T), jnp.float32)
    out = jax.block_until_ready(
        zeroeggs_speech_encoder(x, params, kernel_size, t_tile=t_tile))
    ref = reference_forward(x, params, kernel_size)
    assert out.shape == (B, output_size, T), out.shape
    err = float(jnp.max(jnp.abs(out - ref)))
    # bf16 MXU inputs (f32 accumulation) => tolerance relaxed vs f32 reference.
    assert err < 5e-2, f"f32-I/O mismatch vs reference (max abs err {err})"

    # --- bf16 I/O, ragged T: exercises edge-replicate padding to a full tile ---
    T2 = 200
    x2 = jax.random.normal(kx2, (B, N_AUDIO_FEATS, T2), jnp.float32)
    x2_bf = x2.astype(jnp.bfloat16)
    params_bf = tuple(p.astype(jnp.bfloat16) for p in params)
    out_bf = jax.block_until_ready(
        zeroeggs_speech_encoder(x2_bf, params_bf, kernel_size, t_tile=t_tile))
    assert out_bf.shape == (B, output_size, T2), out_bf.shape
    assert out_bf.dtype == jnp.bfloat16
    ref_bf = reference_forward(x2_bf, params_bf, kernel_size)
    err_bf = float(jnp.max(jnp.abs(out_bf.astype(jnp.float32) - ref_bf)))
    assert err_bf < 7.5e-2, f"bf16-I/O mismatch vs reference (max abs err {err_bf})"

    print("KERNEL_OK")
</pallas_src>

<mosaic_0001>
module attributes {stable_mosaic.version = 11 : i64} {
  func.func @_zeroeggs_kernel(%arg0: i32, %arg1: i32, %arg2: memref<1x16x128xf32, #tpu.memory_space<vmem>>, %arg3: memref<1x1x16x4xf32, #tpu.memory_space<vmem>>, %arg4: memref<32x16xbf16, #tpu.memory_space<vmem>>, %arg5: memref<32x1xf32, #tpu.memory_space<vmem>>, %arg6: memref<32x160xbf16, #tpu.memory_space<vmem>>, %arg7: memref<32x1xf32, #tpu.memory_space<vmem>>, %arg8: memref<32x32xbf16, #tpu.memory_space<vmem>>, %arg9: memref<32x1xf32, #tpu.memory_space<vmem>>, %arg10: memref<1x32x128xf32, #tpu.memory_space<vmem>>, %arg11: memref<160x128xbf16, #tpu.memory_space<vmem>>) attributes {dimension_semantics = [#tpu.dimension_semantics<parallel>, #tpu.dimension_semantics<parallel>], iteration_bounds = array<i64: 2, 3>, scalar_prefetch = 0 : i64, scratch_operands = 1 : i64, tpu.core_type = #tpu.core_type<tc>, window_params = [{transform_indices = @transform_0, window_bounds = array<i64: 1, 16, 128>}, {transform_indices = @transform_1, window_bounds = array<i64: 1, 1, 16, 4>}, {pipeline_mode = #tpu.pipeline_mode<synchronous>, transform_indices = @transform_2, window_bounds = array<i64: 32, 16>}, {pipeline_mode = #tpu.pipeline_mode<synchronous>, transform_indices = @transform_3, window_bounds = array<i64: 32, 1>}, {pipeline_mode = #tpu.pipeline_mode<synchronous>, transform_indices = @transform_4, window_bounds = array<i64: 32, 160>}, {pipeline_mode = #tpu.pipeline_mode<synchronous>, transform_indices = @transform_5, window_bounds = array<i64: 32, 1>}, {pipeline_mode = #tpu.pipeline_mode<synchronous>, transform_indices = @transform_6, window_bounds = array<i64: 32, 32>}, {pipeline_mode = #tpu.pipeline_mode<synchronous>, transform_indices = @transform_7, window_bounds = array<i64: 32, 1>}, {transform_indices = @transform_8, window_bounds = array<i64: 1, 32, 128>}]} {
    %c0 = arith.constant 0 : index
    %c0_0 = arith.constant 0 : index
    %c0_1 = arith.constant 0 : index
    %0 = vector.load %arg2[%c0, %c0_0, %c0_1] : memref<1x16x128xf32, #tpu.memory_space<vmem>>, vector<1x16x128xf32>
    %1 = vector.shape_cast %0 : vector<1x16x128xf32> to vector<16x128xf32>
    %2 = arith.truncf %1 : vector<16x128xf32> to vector<16x128xbf16>
    %c0_2 = arith.constant 0 : index
    %c0_3 = arith.constant 0 : index
    %3 = vector.load %arg4[%c0_2, %c0_3] : memref<32x16xbf16, #tpu.memory_space<vmem>>, vector<32x16xbf16>
    %cst = arith.constant dense<0.000000e+00> : vector<32x128xf32>
    %4 = tpu.matmul %3, %2, %cst {dimension_numbers = #tpu.dot_dimension_numbers<[1], [0], [0], [1], [0, 0, 1, 1], [], []>} : vector<32x16xbf16>, vector<16x128xbf16>, vector<32x128xf32> -> vector<32x128xf32>
    %c0_4 = arith.constant 0 : index
    %c0_5 = arith.constant 0 : index
    %5 = vector.load %arg5[%c0_4, %c0_5] : memref<32x1xf32, #tpu.memory_space<vmem>>, vector<32x1xf32>
    %6 = vector.broadcast %5 : vector<32x1xf32> to vector<32x128xf32>
    %7 = arith.addf %4, %6 : vector<32x128xf32>
    %cst_6 = arith.constant 0.000000e+00 : f32
    %8 = vector.broadcast %cst_6 : f32 to vector<32x128xf32>
    %9 = arith.cmpf ogt, %7, %8 : vector<32x128xf32>
    %cst_7 = arith.constant 0.000000e+00 : f32
    %10 = vector.broadcast %cst_7 : f32 to vector<32x128xf32>
    %11 = arith.minimumf %7, %10 : vector<32x128xf32>
    %12 = math.exp %11 : vector<32x128xf32>
    %cst_8 = arith.constant 1.000000e+00 : f32
    %13 = vector.broadcast %cst_8 : f32 to vector<32x128xf32>
    %14 = arith.subf %12, %13 : vector<32x128xf32>
    %15 = arith.select %9, %7, %14 : vector<32x128xi1>, vector<32x128xf32>
    %c0_9 = arith.constant 0 : index
    %c0_10 = arith.constant 0 : index
    %c0_11 = arith.constant 0 : index
    %c0_12 = arith.constant 0 : index
    %16 = vector.load %arg3[%c0_9, %c0_10, %c0_11, %c0_12] : memref<1x1x16x4xf32, #tpu.memory_space<vmem>>, vector<1x1x16x4xf32>
    %17 = vector.shape_cast %16 : vector<1x1x16x4xf32> to vector<16x4xf32>
    %18 = arith.truncf %17 : vector<16x4xf32> to vector<16x4xbf16>
    %c0_13 = arith.constant 0 : index
    %c0_14 = arith.constant 0 : index
    %19 = vector.load %arg4[%c0_13, %c0_14] : memref<32x16xbf16, #tpu.memory_space<vmem>>, vector<32x16xbf16>
    %cst_15 = arith.constant dense<0.000000e+00> : vector<32x4xf32>
    %20 = tpu.matmul %19, %18, %cst_15 {dimension_numbers = #tpu.dot_dimension_numbers<[1], [0], [0], [1], [0, 0, 1, 1], [], []>} : vector<32x16xbf16>, vector<16x4xbf16>, vector<32x4xf32> -> vector<32x4xf32>
    %c0_16 = arith.constant 0 : index
    %c0_17 = arith.constant 0 : index
    %21 = vector.load %arg5[%c0_16, %c0_17] : memref<32x1xf32, #tpu.memory_space<vmem>>, vector<32x1xf32>
    %22 = vector.broadcast %21 : vector<32x1xf32> to vector<32x4xf32>
    %23 = arith.addf %20, %22 : vector<32x4xf32>
    %cst_18 = arith.constant 0.000000e+00 : f32
    %24 = vector.broadcast %cst_18 : f32 to vector<32x4xf32>
    %25 = arith.cmpf ogt, %23, %24 : vector<32x4xf32>
    %cst_19 = arith.constant 0.000000e+00 : f32
    %26 = vector.broadcast %cst_19 : f32 to vector<32x4xf32>
    %27 = arith.minimumf %23, %26 : vector<32x4xf32>
    %28 = math.exp %27 : vector<32x4xf32>
    %cst_20 = arith.constant 1.000000e+00 : f32
    %29 = vector.broadcast %cst_20 : f32 to vector<32x4xf32>
    %30 = arith.subf %28, %29 : vector<32x4xf32>
    %31 = arith.select %25, %23, %30 : vector<32x4xi1>, vector<32x4xf32>
    %cst_21 = arith.constant 0.000000e+00 : f32
    %32 = vector.broadcast %cst_21 : f32 to vector<32x124xf32>
    %33 = tpu.concatenate %31, %32 in 1 : vector<32x4xf32>, vector<32x124xf32> -> vector<32x128xf32>
    %34 = tpu.iota {dimensions = array<i32: 1>} : vector<32x128xi32>
    %c2_i32 = arith.constant 2 : i32
    %35 = vector.broadcast %c2_i32 : i32 to vector<32x128xi32>
    %36 = arith.cmpi slt, %34, %35 : vector<32x128xi32>
    %c2_i32_22 = arith.constant 2 : i32
    %37 = tpu.dynamic_rotate %15 by %c2_i32_22 dim 1 : vector<32x128xf32>, i32 -> vector<32x128xf32>
    %38 = arith.select %36, %33, %37 : vector<32x128xi1>, vector<32x128xf32>
    %39 = arith.truncf %38 : vector<32x128xf32> to vector<32x128xbf16>
    %c0_23 = arith.constant 0 : index
    %c0_24 = arith.constant 0 : index
    %40 = vector.load %arg11[%c0_23, %c0_24] : memref<160x128xbf16, #tpu.memory_space<vmem>>, vector<32x128xbf16>
    tpu.vector_store %arg11[%c0_23, %c0_24], %39 {strides = array<i32>} : memref<160x128xbf16, #tpu.memory_space<vmem>>, vector<32x128xbf16>,
    %c1_i32 = arith.constant 1 : i32
    %41 = vector.broadcast %c1_i32 : i32 to vector<32x128xi32>
    %42 = arith.cmpi slt, %34, %41 : vector<32x128xi32>
    %c127_i32 = arith.constant 127 : i32
    %43 = tpu.dynamic_rotate %33 by %c127_i32 dim 1 : vector<32x128xf32>, i32 -> vector<32x128xf32>
    %c1_i32_25 = arith.constant 1 : i32
    %44 = tpu.dynamic_rotate %15 by %c1_i32_25 dim 1 : vector<32x128xf32>, i32 -> vector<32x128xf32>
    %45 = arith.select %42, %43, %44 : vector<32x128xi1>, vector<32x128xf32>
    %46 = arith.truncf %45 : vector<32x128xf32> to vector<32x128xbf16>
    %c32 = arith.constant 32 : index
    %c0_26 = arith.constant 0 : index
    %47 = vector.load %arg11[%c32, %c0_26] : memref<160x128xbf16, #tpu.memory_space<vmem>>, vector<32x128xbf16>
    tpu.vector_store %arg11[%c32, %c0_26], %46 {strides = array<i32>} : memref<160x128xbf16, #tpu.memory_space<vmem>>, vector<32x128xbf16>,
    %48 = arith.truncf %15 : vector<32x128xf32> to vector<32x128xbf16>
    %c64 = arith.constant 64 : index
    %c0_27 = arith.constant 0 : index
    %49 = vector.load %arg11[%c64, %c0_27] : memref<160x128xbf16, #tpu.memory_space<vmem>>, vector<32x128xbf16>
    tpu.vector_store %arg11[%c64, %c0_27], %48 {strides = array<i32>} : memref<160x128xbf16, #tpu.memory_space<vmem>>, vector<32x128xbf16>,
    %c127_i32_28 = arith.constant 127 : i32
    %50 = vector.broadcast %c127_i32_28 : i32 to vector<32x128xi32>
    %51 = arith.cmpi sge, %34, %50 : vector<32x128xi32>
    %c125_i32 = arith.constant 125 : i32
    %52 = tpu.dynamic_rotate %33 by %c125_i32 dim 1 : vector<32x128xf32>, i32 -> vector<32x128xf32>
    %c127_i32_29 = arith.constant 127 : i32
    %53 = tpu.dynamic_rotate %15 by %c127_i32_29 dim 1 : vector<32x128xf32>, i32 -> vector<32x128xf32>
    %54 = arith.select %51, %52, %53 : vector<32x128xi1>, vector<32x128xf32>
    %55 = arith.truncf %54 : vector<32x128xf32> to vector<32x128xbf16>
    %c96 = arith.constant 96 : index
    %c0_30 = arith.constant 0 : index
    %56 = vector.load %arg11[%c96, %c0_30] : memref<160x128xbf16, #tpu.memory_space<vmem>>, vector<32x128xbf16>
    tpu.vector_store %arg11[%c96, %c0_30], %55 {strides = array<i32>} : memref<160x128xbf16, #tpu.memory_space<vmem>>, vector<32x128xbf16>,
    %c126_i32 = arith.constant 126 : i32
    %57 = vector.broadcast %c126_i32 : i32 to vector<32x128xi32>
    %58 = arith.cmpi sge, %34, %57 : vector<32x128xi32>
    %c124_i32 = arith.constant 124 : i32
    %59 = tpu.dynamic_rotate %33 by %c124_i32 dim 1 : vector<32x128xf32>, i32 -> vector<32x128xf32>
    %c126_i32_31 = arith.constant 126 : i32
    %60 = tpu.dynamic_rotate %15 by %c126_i32_31 dim 1 : vector<32x128xf32>, i32 -> vector<32x128xf32>
    %61 = arith.select %58, %59, %60 : vector<32x128xi1>, vector<32x128xf32>
    %62 = arith.truncf %61 : vector<32x128xf32> to vector<32x128xbf16>
    %c128 = arith.constant 128 : index
    %c0_32 = arith.constant 0 : index
    %63 = vector.load %arg11[%c128, %c0_32] : memref<160x128xbf16, #tpu.memory_space<vmem>>, vector<32x128xbf16>
    tpu.vector_store %arg11[%c128, %c0_32], %62 {strides = array<i32>} : memref<160x128xbf16, #tpu.memory_space<vmem>>, vector<32x128xbf16>,
    %c0_33 = arith.constant 0 : index
    %c0_34 = arith.constant 0 : index
    %64 = vector.load %arg6[%c0_33, %c0_34] : memref<32x160xbf16, #tpu.memory_space<vmem>>, vector<32x160xbf16>
    %c0_35 = arith.constant 0 : index
    %c0_36 = arith.constant 0 : index
    %65 = vector.load %arg11[%c0_35, %c0_36] : memref<160x128xbf16, #tpu.memory_space<vmem>>, vector<160x128xbf16>
    %cst_37 = arith.constant dense<0.000000e+00> : vector<32x128xf32>
    %66 = tpu.matmul %64, %65, %cst_37 {dimension_numbers = #tpu.dot_dimension_numbers<[1], [0], [0], [1], [0, 0, 1, 1], [], []>} : vector<32x160xbf16>, vector<160x128xbf16>, vector<32x128xf32> -> vector<32x128xf32>
    %c0_38 = arith.constant 0 : index
    %c0_39 = arith.constant 0 : index
    %67 = vector.load %arg7[%c0_38, %c0_39] : memref<32x1xf32, #tpu.memory_space<vmem>>, vector<32x1xf32>
    %68 = vector.broadcast %67 : vector<32x1xf32> to vector<32x128xf32>
    %69 = arith.addf %66, %68 : vector<32x128xf32>
    %cst_40 = arith.constant 0.000000e+00 : f32
    %70 = vector.broadcast %cst_40 : f32 to vector<32x128xf32>
    %71 = arith.cmpf ogt, %69, %70 : vector<32x128xf32>
    %cst_41 = arith.constant 0.000000e+00 : f32
    %72 = vector.broadcast %cst_41 : f32 to vector<32x128xf32>
    %73 = arith.minimumf %69, %72 : vector<32x128xf32>
    %74 = math.exp %73 : vector<32x128xf32>
    %cst_42 = arith.constant 1.000000e+00 : f32
    %75 = vector.broadcast %cst_42 : f32 to vector<32x128xf32>
    %76 = arith.subf %74, %75 : vector<32x128xf32>
    %77 = arith.select %71, %69, %76 : vector<32x128xi1>, vector<32x128xf32>
    %78 = arith.truncf %77 : vector<32x128xf32> to vector<32x128xbf16>
    %c0_43 = arith.constant 0 : index
    %c0_44 = arith.constant 0 : index
    %79 = vector.load %arg8[%c0_43, %c0_44] : memref<32x32xbf16, #tpu.memory_space<vmem>>, vector<32x32xbf16>
    %cst_45 = arith.constant dense<0.000000e+00> : vector<32x128xf32>
    %80 = tpu.matmul %79, %78, %cst_45 {dimension_numbers = #tpu.dot_dimension_numbers<[1], [0], [0], [1], [0, 0, 1, 1], [], []>} : vector<32x32xbf16>, vector<32x128xbf16>, vector<32x128xf32> -> vector<32x128xf32>
    %c0_46 = arith.constant 0 : index
    %c0_47 = arith.constant 0 : index
    %81 = vector.load %arg9[%c0_46, %c0_47] : memref<32x1xf32, #tpu.memory_space<vmem>>, vector<32x1xf32>
    %82 = vector.broadcast %81 : vector<32x1xf32> to vector<32x128xf32>
    %83 = arith.addf %80, %82 : vector<32x128xf32>
    %cst_48 = arith.constant 0.000000e+00 : f32
    %84 = vector.broadcast %cst_48 : f32 to vector<32x128xf32>
    %85 = arith.cmpf ogt, %83, %84 : vector<32x128xf32>
    %cst_49 = arith.constant 0.000000e+00 : f32
    %86 = vector.broadcast %cst_49 : f32 to vector<32x128xf32>
    %87 = arith.minimumf %83, %86 : vector<32x128xf32>
    %88 = math.exp %87 : vector<32x128xf32>
    %cst_50 = arith.constant 1.000000e+00 : f32
    %89 = vector.broadcast %cst_50 : f32 to vector<32x128xf32>
    %90 = arith.subf %88, %89 : vector<32x128xf32>
    %91 = arith.select %85, %83, %90 : vector<32x128xi1>, vector<32x128xf32>
    %c0_51 = arith.constant 0 : index
    %c0_52 = arith.constant 0 : index
    %c0_53 = arith.constant 0 : index
    %92 = vector.load %arg10[%c0_51, %c0_52, %c0_53] : memref<1x32x128xf32, #tpu.memory_space<vmem>>, vector<1x32x128xf32>
    %93 = vector.shape_cast %92 : vector<1x32x128xf32> to vector<32x128xf32>
    %94 = vector.shape_cast %91 : vector<32x128xf32> to vector<1x32x128xf32>
    tpu.vector_store %arg10[%c0_51, %c0_52, %c0_53], %94 {strides = array<i32>} : memref<1x32x128xf32, #tpu.memory_space<vmem>>, vector<1x32x128xf32>,
    return
  }
  func.func @transform_0(%arg0: i32, %arg1: i32) -> (i32, i32, i32) {
    %c0_i32 = arith.constant 0 : i32
    %c0_i32_0 = arith.constant 0 : i32
    return %arg0, %c0_i32, %arg1 : i32, i32, i32
  }
  func.func @transform_1(%arg0: i32, %arg1: i32) -> (i32, i32, i32, i32) {
    %c0_i32 = arith.constant 0 : i32
    %c0_i32_0 = arith.constant 0 : i32
    %c0_i32_1 = arith.constant 0 : i32
    return %arg0, %arg1, %c0_i32, %c0_i32_0 : i32, i32, i32, i32
  }
  func.func @transform_2(%arg0: i32, %arg1: i32) -> (i32, i32) {
    %c0_i32 = arith.constant 0 : i32
    %c0_i32_0 = arith.constant 0 : i32
    %c0_i32_1 = arith.constant 0 : i32
    return %c0_i32, %c0_i32_0 : i32, i32
  }
  func.func @transform_3(%arg0: i32, %arg1: i32) -> (i32, i32) {
    %c0_i32 = arith.constant 0 : i32
    %c0_i32_0 = arith.constant 0 : i32
    %c0_i32_1 = arith.constant 0 : i32
    return %c0_i32, %c0_i32_0 : i32, i32
  }
  func.func @transform_4(%arg0: i32, %arg1: i32) -> (i32, i32) {
    %c0_i32 = arith.constant 0 : i32
    %c0_i32_0 = arith.constant 0 : i32
    %c0_i32_1 = arith.constant 0 : i32
    return %c0_i32, %c0_i32_0 : i32, i32
  }
  func.func @transform_5(%arg0: i32, %arg1: i32) -> (i32, i32) {
    %c0_i32 = arith.constant 0 : i32
    %c0_i32_0 = arith.constant 0 : i32
    %c0_i32_1 = arith.constant 0 : i32
    return %c0_i32, %c0_i32_0 : i32, i32
  }
  func.func @transform_6(%arg0: i32, %arg1: i32) -> (i32, i32) {
    %c0_i32 = arith.constant 0 : i32
    %c0_i32_0 = arith.constant 0 : i32
    %c0_i32_1 = arith.constant 0 : i32
    return %c0_i32, %c0_i32_0 : i32, i32
  }
  func.func @transform_7(%arg0: i32, %arg1: i32) -> (i32, i32) {
    %c0_i32 = arith.constant 0 : i32
    %c0_i32_0 = arith.constant 0 : i32
    %c0_i32_1 = arith.constant 0 : i32
    return %c0_i32, %c0_i32_0 : i32, i32
  }
  func.func @transform_8(%arg0: i32, %arg1: i32) -> (i32, i32, i32) {
    %c0_i32 = arith.constant 0 : i32
    %c0_i32_0 = arith.constant 0 : i32
    return %arg0, %c0_i32, %arg1 : i32, i32, i32
  }
}

</mosaic_0001>

<llo_original>
// kernel: zeroeggs_speech_encoder.1
$region0: #{zeroeggs_speech_encoder.1}
  #allocation0 [shape = 'u32[]', space=smem, size = 0x4, offset = 0x4, fixed_abs, tag = 'smem constant byte address 0x4 - core index']
  #allocation1 [shape = 'u32[144,128]{1,0:T(1,128)}', space=vmem, size = 0x12000, scoped, tag = 'internal scratch']
  #allocation2 [shape = 'bf16[160,128]{1,0:T(8,128)(2,1)}', space=vmem, size = 0xa000, scoped, tag = 'scratch operand']
  %s0 = inlined_call_operand.vmem [shape: f32[2,16,384], index: 0, kind: input, shape index: {}]
  %s1 = inlined_call_operand.vmem [shape: f32[2,3,16,4], index: 1, kind: input, shape index: {}]
  %s2 = inlined_call_operand.vmem [shape: bf16[32,16], index: 2, kind: input, shape index: {}]
  %s3 = inlined_call_operand.vmem [shape: f32[32,1], index: 3, kind: input, shape index: {}]
  %s4 = inlined_call_operand.vmem [shape: bf16[32,160], index: 4, kind: input, shape index: {}]
  %s5 = inlined_call_operand.vmem [shape: f32[32,1], index: 5, kind: input, shape index: {}]
  %s6 = inlined_call_operand.vmem [shape: bf16[32,32], index: 6, kind: input, shape index: {}]
  %s7 = inlined_call_operand.vmem [shape: f32[32,1], index: 7, kind: input, shape index: {}]
  %s8 = inlined_call_operand.hbm [shape: f32[2,32,384], index: 8, kind: output, shape index: {}]
  %s9 = sld [smem:[#allocation0]]
  $region103: #{zeroeggs_speech_encoder.1} parent=0
    _
  %s11 = ssub.s32 1, %s9
  %s12 = scalar_select 0, %s11, %s9
  $region1: #{zeroeggs_speech_encoder.1} parent=0
    #allocation3 [shape = 'u8[16384]{0}', space=vmem, size = 0x4000, scoped, tag = 'input window, operand 0']
    #allocation4 [shape = 'u8[32768]{0}', space=vmem, size = 0x8000, scoped, tag = 'output window, operand 0']
    #allocation5 [shape = 's32[2]{0}', space=sflag, size = 0x8, scoped, tag = 'scoped memory for zeroeggs_speech_encoder.1']
    %13 = vsyncpa [#allocation5], 0
    %s14 = scalar_lea.sflag [#allocation5], 1
    %15 = vsyncpa %s14, 0
    loop: start=0, step=1, limit=8
    $region2: #{zeroeggs_speech_encoder.1} parent=1 // loop_pre_header
      _
    $region3: #{zeroeggs_speech_encoder.1} parent=1 // loop_header
      %s17 = sphi 0, %s21
      %p18 = scmp.ge.s32.totalorder %s17, 8
      %s24 = sphi 0, %s36
      %s25 = sphi 0, %s32
      %s26 = sphi 0, %s24
      %s27 = sphi 0, %s25
      %s28 = sphi 0, %s26
      %s29 = sphi 0, %s27
      %s41 = sphi 0, %s43
      %s44 = sphi 0, %s41
      %s45 = sphi 0, %s44
      %s61 = sphi 0, %s45
      %s69 = sphi 0, %s71
      %s72 = sphi 0, %s69
      %s73 = sphi 0, %s72
      %s89 = sphi 0, %s73
      %s93 = sphi 0, %s93
      %s95 = sphi 0, %s93
      %s96 = sphi 0, %s95
      %s110 = sphi 0, %s96
      %s114 = sphi 0, %s114
      %s116 = sphi 0, %s114
      %s117 = sphi 0, %s116
      %s131 = sphi 0, %s117
      %s135 = sphi 0, %s135
      %s137 = sphi 0, %s135
      %s138 = sphi 0, %s137
      %s152 = sphi 0, %s138
      %s156 = sphi 0, %s156
      %s158 = sphi 0, %s156
      %s159 = sphi 0, %s158
      %s173 = sphi 0, %s159
      %s177 = sphi 0, %s177
      %s179 = sphi 0, %s177
      %s180 = sphi 0, %s179
      %s194 = sphi 0, %s180
      %s198 = sphi 0, %s198
      %s200 = sphi 0, %s198
      %s201 = sphi 0, %s200
      %s215 = sphi 0, %s201
      %s223 = sphi 0, %s225
      %s226 = sphi 0, %s223
      %s227 = sphi 0, %s226
      %s243 = sphi 0, %s227
    $region4: #{zeroeggs_speech_encoder.1} parent=1 // loop_header_branch
      %20 = sbr.rel (%p18) target = $region8
    $region5: #{zeroeggs_speech_encoder.1} parent=1 // loop_body
      %s22 = ssub.s32 %s17, 1
      %s23 = ssub.s32 %s17, 2
      %s30 = sadd.s32 1, %s25
      %p31 = scmp.ge.s32.totalorder %s30, 3
      %s32 = scalar_select %p31, 0, %s30
      %s33 = sadd.s32 1, %s24
      %s34 = scalar_select %p31, %s33, %s24
      %p35 = scmp.ge.s32.totalorder %s34, 2
      %s36 = scalar_select %p35, 0, %s34
      %s37 = ssub.s32 %s24, %s36
      %s38 = ssub.s32 %s25, %s32
      %s39 = sor.u32 %s37, %s38
      %p40 = scmp.eq.s32.totalorder %s39, 0
      %s42 = sadd.s32 %s41, 1
      %s43 = scalar_select %p40, %s41, %s42
      %p46 = pneg %p40
      %p47 = scmp.eq.s32.totalorder %s17, 5
      %p48 = por %p46, %p47
      %p49 = scmp.ne.s32.totalorder %s41, %s44
      %p50 = scmp.eq.s32.totalorder %s17, 0
      %p51 = por %p49, %p50
      %p52 = scmp.ne.s32.totalorder %s41, %s44
      %p53 = scmp.eq.s32.totalorder %s22, 5
      %p54 = por %p52, %p53
      %p55 = scmp.ne.s32.totalorder %s44, %s45
      %p56 = scmp.eq.s32.totalorder %s22, 0
      %p57 = por %p55, %p56
      %p58 = scmp.ne.s32.totalorder %s44, %s45
      %p59 = scmp.eq.s32.totalorder %s23, 5
      %p60 = por %p58, %p59
      %p62 = scmp.ne.s32.totalorder %s45, %s61
      %p63 = scmp.eq.s32.totalorder %s23, 0
      %p64 = por %p62, %p63
      %s65 = ssub.s32 %s24, %s36
      %s66 = ssub.s32 %s25, %s32
      %s67 = sor.u32 %s65, %s66
      %p68 = scmp.eq.s32.totalorder %s67, 0
      %s70 = sadd.s32 %s69, 1
      %s71 = scalar_select %p68, %s69, %s70
      %p74 = pneg %p68
      %p75 = scmp.eq.s32.totalorder %s17, 5
      %p76 = por %p74, %p75
      %p77 = scmp.ne.s32.totalorder %s69, %s72
      %p78 = scmp.eq.s32.totalorder %s17, 0
      %p79 = por %p77, %p78
      %p80 = scmp.ne.s32.totalorder %s69, %s72
      %p81 = scmp.eq.s32.totalorder %s22, 5
      %p82 = por %p80, %p81
      %p83 = scmp.ne.s32.totalorder %s72, %s73
      %p84 = scmp.eq.s32.totalorder %s22, 0
      %p85 = por %p83, %p84
      %p86 = scmp.ne.s32.totalorder %s72, %s73
      %p87 = scmp.eq.s32.totalorder %s23, 5
      %p88 = por %p86, %p87
      %p90 = scmp.ne.s32.totalorder %s73, %s89
      %p91 = scmp.eq.s32.totalorder %s23, 0
      %p92 = por %p90, %p91
      %s94 = sadd.s32 %s93, 1
      %p97 = scmp.eq.s32.totalorder %s17, 5
      %p98 = scmp.ne.s32.totalorder %s93, %s95
      %p99 = scmp.eq.s32.totalorder %s17, 0
      %p100 = por %p98, %p99
      %p101 = scmp.ne.s32.totalorder %s93, %s95
      %p102 = scmp.eq.s32.totalorder %s22, 5
      %p103 = por %p101, %p102
      %p104 = scmp.ne.s32.totalorder %s95, %s96
      %p105 = scmp.eq.s32.totalorder %s22, 0
      %p106 = por %p104, %p105
      %p107 = scmp.ne.s32.totalorder %s95, %s96
      %p108 = scmp.eq.s32.totalorder %s23, 5
      %p109 = por %p107, %p108
      %p111 = scmp.ne.s32.totalorder %s96, %s110
      %p112 = scmp.eq.s32.totalorder %s23, 0
      %p113 = por %p111, %p112
      %s115 = sadd.s32 %s114, 1
      %p118 = scmp.eq.s32.totalorder %s17, 5
      %p119 = scmp.ne.s32.totalorder %s114, %s116
      %p120 = scmp.eq.s32.totalorder %s17, 0
      %p121 = por %p119, %p120
      %p122 = scmp.ne.s32.totalorder %s114, %s116
      %p123 = scmp.eq.s32.totalorder %s22, 5
      %p124 = por %p122, %p123
      %p125 = scmp.ne.s32.totalorder %s116, %s117
      %p126 = scmp.eq.s32.totalorder %s22, 0
      %p127 = por %p125, %p126
      %p128 = scmp.ne.s32.totalorder %s116, %s117
      %p129 = scmp.eq.s32.totalorder %s23, 5
      %p130 = por %p128, %p129
      %p132 = scmp.ne.s32.totalorder %s117, %s131
      %p133 = scmp.eq.s32.totalorder %s23, 0
      %p134 = por %p132, %p133
      %s136 = sadd.s32 %s135, 1
      %p139 = scmp.eq.s32.totalorder %s17, 5
      %p140 = scmp.ne.s32.totalorder %s135, %s137
      %p141 = scmp.eq.s32.totalorder %s17, 0
      %p142 = por %p140, %p141
      %p143 = scmp.ne.s32.totalorder %s135, %s137
      %p144 = scmp.eq.s32.totalorder %s22, 5
      %p145 = por %p143, %p144
      %p146 = scmp.ne.s32.totalorder %s137, %s138
      %p147 = scmp.eq.s32.totalorder %s22, 0
      %p148 = por %p146, %p147
      %p149 = scmp.ne.s32.totalorder %s137, %s138
      %p150 = scmp.eq.s32.totalorder %s23, 5
      %p151 = por %p149, %p150
      %p153 = scmp.ne.s32.totalorder %s138, %s152
      %p154 = scmp.eq.s32.totalorder %s23, 0
      %p155 = por %p153, %p154
      %s157 = sadd.s32 %s156, 1
      %p160 = scmp.eq.s32.totalorder %s17, 5
      %p161 = scmp.ne.s32.totalorder %s156, %s158
      %p162 = scmp.eq.s32.totalorder %s17, 0
      %p163 = por %p161, %p162
      %p164 = scmp.ne.s32.totalorder %s156, %s158
      %p165 = scmp.eq.s32.totalorder %s22, 5
      %p166 = por %p164, %p165
      %p167 = scmp.ne.s32.totalorder %s158, %s159
      %p168 = scmp.eq.s32.totalorder %s22, 0
      %p169 = por %p167, %p168
      %p170 = scmp.ne.s32.totalorder %s158, %s159
      %p171 = scmp.eq.s32.totalorder %s23, 5
      %p172 = por %p170, %p171
      %p174 = scmp.ne.s32.totalorder %s159, %s173
      %p175 = scmp.eq.s32.totalorder %s23, 0
      %p176 = por %p174, %p175
      %s178 = sadd.s32 %s177, 1
      %p181 = scmp.eq.s32.totalorder %s17, 5
      %p182 = scmp.ne.s32.totalorder %s177, %s179
      %p183 = scmp.eq.s32.totalorder %s17, 0
      %p184 = por %p182, %p183
      %p185 = scmp.ne.s32.totalorder %s177, %s179
      %p186 = scmp.eq.s32.totalorder %s22, 5
      %p187 = por %p185, %p186
      %p188 = scmp.ne.s32.totalorder %s179, %s180
      %p189 = scmp.eq.s32.totalorder %s22, 0
      %p190 = por %p188, %p189
      %p191 = scmp.ne.s32.totalorder %s179, %s180
      %p192 = scmp.eq.s32.totalorder %s23, 5
      %p193 = por %p191, %p192
      %p195 = scmp.ne.s32.totalorder %s180, %s194
      %p196 = scmp.eq.s32.totalorder %s23, 0
      %p197 = por %p195, %p196
      %s199 = sadd.s32 %s198, 1
      %p202 = scmp.eq.s32.totalorder %s17, 5
      %p203 = scmp.ne.s32.totalorder %s198, %s200
      %p204 = scmp.eq.s32.totalorder %s17, 0
      %p205 = por %p203, %p204
      %p206 = scmp.ne.s32.totalorder %s198, %s200
      %p207 = scmp.eq.s32.totalorder %s22, 5
      %p208 = por %p206, %p207
      %p209 = scmp.ne.s32.totalorder %s200, %s201
      %p210 = scmp.eq.s32.totalorder %s22, 0
      %p211 = por %p209, %p210
      %p212 = scmp.ne.s32.totalorder %s200, %s201
      %p213 = scmp.eq.s32.totalorder %s23, 5
      %p214 = por %p212, %p213
      %p216 = scmp.ne.s32.totalorder %s201, %s215
      %p217 = scmp.eq.s32.totalorder %s23, 0
      %p218 = por %p216, %p217
      %s219 = ssub.s32 %s24, %s36
      %s220 = ssub.s32 %s25, %s32
      %s221 = sor.u32 %s219, %s220
      %p222 = scmp.eq.s32.totalorder %s221, 0
      %s224 = sadd.s32 %s223, 1
      %s225 = scalar_select %p222, %s223, %s224
      %p228 = pneg %p222
      %p229 = scmp.eq.s32.totalorder %s17, 5
      %p230 = por %p228, %p229
      %p231 = scmp.ne.s32.totalorder %s223, %s226
      %p232 = scmp.eq.s32.totalorder %s17, 0
      %p233 = por %p231, %p232
      %p234 = scmp.ne.s32.totalorder %s223, %s226
      %p235 = scmp.eq.s32.totalorder %s22, 5
      %p236 = por %p234, %p235
      %p237 = scmp.ne.s32.totalorder %s226, %s227
      %p238 = scmp.eq.s32.totalorder %s22, 0
      %p239 = por %p237, %p238
      %p240 = scmp.ne.s32.totalorder %s226, %s227
      %p241 = scmp.eq.s32.totalorder %s23, 5
      %p242 = por %p240, %p241
      %p244 = scmp.ne.s32.totalorder %s227, %s243
      %p245 = scmp.eq.s32.totalorder %s23, 0
      %p246 = por %p244, %p245
      %p247 = scmp.le.s32.totalorder 1, %s17
      %p248 = scmp.lt.s32.totalorder %s17, 7
      %p249 = pnand %p247, %p248
      %p250 = pneg %p249
      // Predicated region
      $region9: #{zeroeggs_speech_encoder.1} parent=5 // pred_check
        _
      $region10: #{zeroeggs_speech_encoder.1} parent=5 // pred_check_branch
        %252 = sbr.rel (%p249) target = $region12
      $region11: #{zeroeggs_speech_encoder.1} parent=5 // pred_region
        %s253 = ssub.s32 %s17, 1
        // Predicated region
        $region13: #{zeroeggs_speech_encoder.1} parent=11 // pred_check
          %p254 = pneg %p106
        $region14: #{zeroeggs_speech_encoder.1} parent=11 // pred_check_branch
          %256 = sbr.rel (%p254) target = $region16
        $region15: #{zeroeggs_speech_encoder.1} parent=11 // pred_region
          _
        $region16: #{zeroeggs_speech_encoder.1} parent=11 // pred_fallthru
          _
        // Predicated region
        $region17: #{zeroeggs_speech_encoder.1} parent=11 // pred_check
          %p257 = pneg %p127
        $region18: #{zeroeggs_speech_encoder.1} parent=11 // pred_check_branch
          %259 = sbr.rel (%p257) target = $region20
        $region19: #{zeroeggs_speech_encoder.1} parent=11 // pred_region
          _
        $region20: #{zeroeggs_speech_encoder.1} parent=11 // pred_fallthru
          _
        // Predicated region
        $region21: #{zeroeggs_speech_encoder.1} parent=11 // pred_check
          %p260 = pneg %p148
        $region22: #{zeroeggs_speech_encoder.1} parent=11 // pred_check_branch
          %262 = sbr.rel (%p260) target = $region24
        $region23: #{zeroeggs_speech_encoder.1} parent=11 // pred_region
          _
        $region24: #{zeroeggs_speech_encoder.1} parent=11 // pred_fallthru
          _
        // Predicated region
        $region25: #{zeroeggs_speech_encoder.1} parent=11 // pred_check
          %p263 = pneg %p169
        $region26: #{zeroeggs_speech_encoder.1} parent=11 // pred_check_branch
          %265 = sbr.rel (%p263) target = $region28
        $region27: #{zeroeggs_speech_encoder.1} parent=11 // pred_region
          _
        $region28: #{zeroeggs_speech_encoder.1} parent=11 // pred_fallthru
          _
        // Predicated region
        $region29: #{zeroeggs_speech_encoder.1} parent=11 // pred_check
          %p266 = pneg %p190
        $region30: #{zeroeggs_speech_encoder.1} parent=11 // pred_check_branch
          %268 = sbr.rel (%p266) target = $region32
        $region31: #{zeroeggs_speech_encoder.1} parent=11 // pred_region
          _
        $region32: #{zeroeggs_speech_encoder.1} parent=11 // pred_fallthru
          _
        // Predicated region
        $region33: #{zeroeggs_speech_encoder.1} parent=11 // pred_check
          %p269 = pneg %p211
        $region34: #{zeroeggs_speech_encoder.1} parent=11 // pred_check_branch
          %271 = sbr.rel (%p269) target = $region36
        $region35: #{zeroeggs_speech_encoder.1} parent=11 // pred_region
          _
        $region36: #{zeroeggs_speech_encoder.1} parent=11 // pred_fallthru
          _
      $region12: #{zeroeggs_speech_encoder.1} parent=5 // pred_fallthru
        _
      %p272 = scmp.lt.s32.totalorder %s17, 6
      // Predicated region
      $region37: #{zeroeggs_speech_encoder.1} parent=5 // pred_check
        %p273 = pneg %p272
      $region38: #{zeroeggs_speech_encoder.1} parent=5 // pred_check_branch
        %275 = sbr.rel (%p273) target = $region40
      $region39: #{zeroeggs_speech_encoder.1} parent=5 // pred_region
        // Predicated region
        $region41: #{zeroeggs_speech_encoder.1} parent=39 // pred_check
          %p276 = pneg %p51
        $region42: #{zeroeggs_speech_encoder.1} parent=39 // pred_check_branch
          %278 = sbr.rel (%p276) target = $region44
        $region43: #{zeroeggs_speech_encoder.1} parent=39 // pred_region
          %s279 = sand.u32 %s41, 1
          %s280 = sand.u32 %s41, 1
          %s281 = smul.addr %s280, 16
          %s282 = scalar_lea.vmem [#allocation3], %s281
          %s283 = smul.addr %s24, 6
          %s284 = sadd.s32 %s25, %s283
          %s285 = smul.addr %s284, 8
          %s286 = scalar_lea.vmem %s0, %s285
          // Predicated region
          $region45: #{zeroeggs_speech_encoder.1} parent=43 // pred_check
            _
          $region46: #{zeroeggs_speech_encoder.1} parent=43 // pred_check_branch
            %288 = sbr.rel (0) target = $region48
          $region47: #{zeroeggs_speech_encoder.1} parent=43 // pred_region
            // Predicated region
            $region49: #{zeroeggs_speech_encoder.1} parent=47 // pred_check
              _
            $region50: #{zeroeggs_speech_encoder.1} parent=47 // pred_check_branch
              %290 = sbr.rel (0) target = $region52
            $region51: #{zeroeggs_speech_encoder.1} parent=47 // pred_region
              // Predicated region
              $region64: #{zeroeggs_speech_encoder.1} parent=51 // pred_check
                _
              $region65: #{zeroeggs_speech_encoder.1} parent=51 // pred_check_branch
                %308 = sbr.rel (0) target = $region67
              $region66: #{zeroeggs_speech_encoder.1} parent=51 // pred_region
                loop: start=0, step=1, limit=1
                $region68: #{zeroeggs_speech_encoder.1} parent=66 // loop_pre_header
                  _
                $region69: #{zeroeggs_speech_encoder.1} parent=66 // loop_header
                  %s310 = sphi 0, %s314
                  %p311 = scmp.ge.s32.totalorder %s310, 1
                  %s315 = sphi %s286, %s286
                  %s316 = sphi %s282, %s282
                $region70: #{zeroeggs_speech_encoder.1} parent=66 // loop_header_branch
                  %313 = sbr.rel (%p311) target = $region74
                $region71: #{zeroeggs_speech_encoder.1} parent=66 // loop_body
                  %v317 = vld [vmem:[%s315] sm:$0xff]
                  %318 = vst [vmem:[%s316] sm:$0xff] %v317
                  %v319 = vld [vmem:[%s315 + $0x18] sm:$0xff]
                  %320 = vst [vmem:[%s316 + $0x8] sm:$0xff] %v319
                $region72: #{zeroeggs_speech_encoder.1} parent=66 // loop_footer
                  %s314 = sadd.s32 1, %s310
                $region73: #{zeroeggs_speech_encoder.1} parent=66 // loop_footer_branch
                  %309 = sbr.rel target = $region69
                $region74: #{zeroeggs_speech_encoder.1} parent=66 // loop_exit
                  _
              $region67: #{zeroeggs_speech_encoder.1} parent=51 // pred_fallthru
                _
              // Predicated region
              $region75: #{zeroeggs_speech_encoder.1} parent=51 // pred_check
                _
              $region76: #{zeroeggs_speech_encoder.1} parent=51 // pred_check_branch
                %322 = sbr.rel target = $region78
              $region77: #{zeroeggs_speech_encoder.1} parent=51 // pred_region
                _
              $region78: #{zeroeggs_speech_encoder.1} parent=51 // pred_fallthru
                _
            $region52: #{zeroeggs_speech_encoder.1} parent=47 // pred_fallthru
              _
            // Predicated region
            $region53: #{zeroeggs_speech_encoder.1} parent=47 // pred_check
              _
            $region54: #{zeroeggs_speech_encoder.1} parent=47 // pred_check_branch
              %292 = sbr.rel target = $region56
            $region55: #{zeroeggs_speech_encoder.1} parent=47 // pred_region
              %s294 = ssub.s32 256, 1
              loop: start=0, step=1, limit=1
              $region57: #{zeroeggs_speech_encoder.1} parent=55 // loop_pre_header
                _
              $region58: #{zeroeggs_speech_encoder.1} parent=55 // loop_header
                %s296 = sphi 0, %s300
                %p297 = scmp.ge.s32.totalorder %s296, 1
                %s301 = sphi %s286, %s286
                %s302 = sphi %s282, %s282
              $region59: #{zeroeggs_speech_encoder.1} parent=55 // loop_header_branch
                %299 = sbr.rel (%p297) target = $region63
              $region60: #{zeroeggs_speech_encoder.1} parent=55 // loop_body
                %v303 = vld [vmem:[%s301] sm:%s294]
                %304 = vst [vmem:[%s302] sm:%s294] %v303
                %v305 = vld [vmem:[%s301 + $0x18] sm:%s294]
                %306 = vst [vmem:[%s302 + $0x8] sm:%s294] %v305
              $region61: #{zeroeggs_speech_encoder.1} parent=55 // loop_footer
                %s300 = sadd.s32 1, %s296
              $region62: #{zeroeggs_speech_encoder.1} parent=55 // loop_footer_branch
                %295 = sbr.rel target = $region58
              $region63: #{zeroeggs_speech_encoder.1} parent=55 // loop_exit
                _
            $region56: #{zeroeggs_speech_encoder.1} parent=47 // pred_fallthru
              _
          $region48: #{zeroeggs_speech_encoder.1} parent=43 // pred_fallthru
            _
          %323 = vnop
        $region44: #{zeroeggs_speech_encoder.1} parent=39 // pred_fallthru
          _
        // Predicated region
        $region79: #{zeroeggs_speech_encoder.1} parent=39 // pred_check
          %p324 = pneg %p79
        $region80: #{zeroeggs_speech_encoder.1} parent=39 // pred_check_branch
          %326 = sbr.rel (%p324) target = $region82
        $region81: #{zeroeggs_speech_encoder.1} parent=39 // pred_region
          %p327 = scmp.lt.s32.totalorder %s24, 1
          %s328 = scalar_select %p327, %s24, 1
          %p329 = scmp.lt.s32.totalorder %s25, 2
          %s330 = scalar_select %p329, %s25, 2
          %s331 = smul.addr %s330, 2
          %s332 = smul.addr %s328, 6
          %s333 = sadd.s32 %s331, %s332
          %s334 = smul.addr %s333, 8
          %s335 = scalar_lea.vmem %s1, %s334
        $region82: #{zeroeggs_speech_encoder.1} parent=39 // pred_fallthru
          _
      $region40: #{zeroeggs_speech_encoder.1} parent=5 // pred_fallthru
        _
      %p336 = scmp.le.s32.totalorder 1, %s17
      %p337 = scmp.lt.s32.totalorder %s17, 7
      %p338 = pnand %p336, %p337
      %p339 = pneg %p338
      // Predicated region
      $region83: #{zeroeggs_speech_encoder.1} parent=5 // pred_check
        _
      $region84: #{zeroeggs_speech_encoder.1} parent=5 // pred_check_branch
        %341 = sbr.rel (%p338) target = $region86
      $region85: #{zeroeggs_speech_encoder.1} parent=5 // pred_region
        %s342 = ssub.s32 %s17, 1
        %s343 = sand.u32 %s44, 1
        %s344 = sand.u32 %s44, 1
        %s345 = smul.addr %s344, 16
        %s346 = scalar_lea.vmem [#allocation3], %s345
        // Predicated region
        $region87: #{zeroeggs_speech_encoder.1} parent=85 // pred_check
          %p347 = pneg %p57
        $region88: #{zeroeggs_speech_encoder.1} parent=85 // pred_check_branch
          %349 = sbr.rel (%p347) target = $region90
        $region89: #{zeroeggs_speech_encoder.1} parent=85 // pred_region
          _
        $region90: #{zeroeggs_speech_encoder.1} parent=85 // pred_fallthru
          _
        %s350 = sand.u32 %s44, 1
        %s351 = sand.u32 %s44, 1
        %s352 = smul.addr %s351, 16
        %s353 = scalar_lea.vmem [#allocation3], %s352
        %p354 = pneg %p57
        %p355 = pneg %p54
        %p356 = scmp.lt.s32.totalorder %s26, 1
        %s357 = scalar_select %p356, %s26, 1
        %p358 = scmp.lt.s32.totalorder %s27, 2
        %s359 = scalar_select %p358, %s27, 2
        %s360 = smul.addr %s359, 2
        %s361 = smul.addr %s357, 6
        %s362 = sadd.s32 %s360, %s361
        %s363 = smul.addr %s362, 8
        %s364 = scalar_lea.vmem %s1, %s363
        %p365 = pneg %p85
        %p366 = pneg %p82
        %p367 = pneg %p106
        %p368 = pneg %p103
        %p369 = pneg %p127
        %p370 = pneg %p124
        %p371 = pneg %p148
        %p372 = pneg %p145
        %p373 = pneg %p169
        %p374 = pneg %p166
        %p375 = pneg %p190
        %p376 = pneg %p187
        %p377 = pneg %p211
        %p378 = pneg %p208
        %p379 = pneg %p239
        %p380 = pneg %p236
        %s381 = sand.u32 %s226, 1
        %s382 = scalar_lea.sflag [#allocation5], %s381
        %s383 = sand.u32 %s226, 1
        %s384 = smul.addr %s383, 32
        %s385 = scalar_lea.vmem [#allocation4], %s384
        %p386 = scmp.lt.s32.totalorder %s26, 1
        %s387 = scalar_select %p386, %s26, 1
        %p388 = scmp.lt.s32.totalorder %s27, 2
        %s389 = scalar_select %p388, %s27, 2
        %s390 = smul.addr %s389, 2
        %s391 = smul.addr %s387, 6
        %s392 = sadd.s32 %s390, %s391
        %s393 = smul.addr %s392, 8
        %s394 = scalar_lea.vmem %s1, %s393
        %v396 = vld [vmem:[%s346] sm:$0xff]
        %v397 = vld [vmem:[%s346 + $0x8] sm:$0xff]
        %v398 = vpack.c.bf16 %v397, %v396
        %v399 = vld [vmem:[%s2] sm:$0xf]
        %v400 = vld [vmem:[%s2 + $0x4] sm:$0xf]
        %v401 = vld [vmem:[%s2 + $0x8] sm:$0xf]
        %v402 = vld [vmem:[%s2 + $0xc] sm:$0xf]
        %v403 = vld [vmem:[%s3] sm:$0xff]
        %v404 = vld [vmem:[%s3 + $0x8] sm:$0xff]
        %v405 = vld [vmem:[%s3 + $0x10] sm:$0xff]
        %v406 = vld [vmem:[%s3 + $0x18] sm:$0xff]
        %408 = vset.pattern.permute.xlu0 0
        %409 = vperm.xlu0 %408, %v403
        %v410 = vpop.permute.xlu0 %409
        %413 = vset.pattern.permute.xlu0 0
        %414 = vperm.xlu0 %413, %v404
        %v415 = vpop.permute.xlu0 %414
        %418 = vset.pattern.permute.xlu0 0
        %419 = vperm.xlu0 %418, %v405
        %v420 = vpop.permute.xlu0 %419
        %423 = vset.pattern.permute.xlu0 0
        %424 = vperm.xlu0 %423, %v406
        %v425 = vpop.permute.xlu0 %424
        %v431 = vunpack.c.l.b16 %v399
        %v432 = vunpack.c.l.b16 %v400
        %v433 = vunpack.c.l.b16 %v401
        %v434 = vunpack.c.l.b16 %v402
        %v435 = vpack.c.b16 %v432, %v431
        %v436 = vpack.c.b16 %v434, %v433
        %vm437 = vcmask 130048
        %v439 = vsel %vm437, %v435, 0
        %v442 = vsel %vm437, %v436, 0
        %444 = vmatprep.subr.bf16.mxu0 0
        %445 = vmatpush1.bf16.msra.mxu0 0
        %446 = vmatprep.subr.bf16.mxu0 0
        %447 = vmatpush1.bf16.msra.mxu0 0
        %448 = vmatprep.subr.bf16.mxu0 0
        %449 = vmatpush1.bf16.msra.mxu0 0
        %450 = vmatprep.subr.bf16.mxu0 0
        %451 = vmatpush1.bf16.msra.mxu0 0
        %452 = vmatprep.subr.bf16.mxu0 0
        %453 = vmatpush1.bf16.msra.mxu0 0
        %454 = vmatprep.subr.bf16.mxu0 0
        %455 = vmatpush1.bf16.msra.mxu0 0
        %456 = vmatprep.subr.bf16.mxu0 0
        %457 = vmatpush1.bf16.msra.mxu0 0
        %458 = vmatprep.subr.bf16.mxu0 0
        %459 = vmatpush1.bf16.msra.mxu0 %v398
        %460 = vmatprep.subr.bf16.mxu0 0
        %461 = vmatpush2.bf16.msra.mxu0 0
        %462 = vmatprep.subr.bf16.mxu0 0
        %463 = vmatpush2.bf16.msra.mxu0 0
        %464 = vmatprep.subr.bf16.mxu0 0
        %465 = vmatpush2.bf16.msra.mxu0 0
        %466 = vmatprep.subr.bf16.mxu0 0
        %467 = vmatpush2.bf16.msra.mxu0 0
        %468 = vmatprep.subr.bf16.mxu0 0
        %469 = vmatpush2.bf16.msra.mxu0 0
        %470 = vmatprep.subr.bf16.mxu0 0
        %471 = vmatpush2.bf16.msra.mxu0 0
        %472 = vmatprep.subr.bf16.mxu0 0
        %473 = vmatpush2.bf16.msra.mxu0 0
        %474 = vmatprep.subr.bf16.mxu0 0
        %475 = vmatpush2.bf16.msra.mxu0 0
        %476 = vmatprep.mubr.bf16.mxu0 0
        %477 = vmatmul.mubr.bf16.gmra.mxu0 %v439
        %v478 = vpop.f32.mrf.mxu0
        %v479 = vadd.f32 %v410, %v478
        %v480 = vpop.f32.mrf.mxu0
        %v481 = vpop.f32.mrf.mxu0
        %v482 = vadd.f32 %v415, %v481
        %v483 = vpop.f32.mrf.mxu0
        %484 = vmatprep.mubr.bf16.mxu0 0
        %485 = vmatmul.mubr.bf16.gmra.mxu0 %v442
        %v486 = vpop.f32.mrf.mxu0
        %v487 = vadd.f32 %v420, %v486
        %v488 = vpop.f32.mrf.mxu0
        %v489 = vpop.f32.mrf.mxu0
        %v490 = vadd.f32 %v425, %v489
        %v491 = vpop.f32.mrf.mxu0
        %492 = vdwg.mxu0
        %vm493 = vcmp.gt.f32.partialorder %v479, 0.0
        %vm494 = vcmp.gt.f32.partialorder %v482, 0.0
        %vm495 = vcmp.gt.f32.partialorder %v487, 0.0
        %vm496 = vcmp.gt.f32.partialorder %v490, 0.0
        %v497 = vmin.f32 %v479, 0.0
        %v498 = vmin.f32 %v482, 0.0
        %v499 = vmin.f32 %v487, 0.0
        %v500 = vmin.f32 %v490, 0.0
        %v501 = vmul.f32 %v497, 1.442695
        %v502 = vpow.pop %v501
        %v503 = vmul.f32 %v498, 1.442695
        %v504 = vpow.pop %v503
        %v505 = vmul.f32 %v499, 1.442695
        %v506 = vpow.pop %v505
        %v507 = vmul.f32 %v500, 1.442695
        %v508 = vpow.pop %v507
        %v509 = vsub.f32 %v502, 1.0
        %v510 = vsub.f32 %v504, 1.0
        %v511 = vsub.f32 %v506, 1.0
        %v512 = vsub.f32 %v508, 1.0
        %v513 = vsel %vm493, %v479, %v509
        %v514 = vsel %vm494, %v482, %v510
        %v515 = vsel %vm495, %v487, %v511
        %v516 = vsel %vm496, %v490, %v512
        %v517 = vld [vmem:[%s394] sm:$0xff]
        %v518 = vld [vmem:[%s394 + $0x8] sm:$0xff]
        %v519 = vpack.c.bf16 %v518, %v517
        %520 = vmatprep.subr.bf16.mxu0 0
        %521 = vmatpush1.bf16.msra.mxu0 0
        %522 = vmatprep.subr.bf16.mxu0 0
        %523 = vmatpush1.bf16.msra.mxu0 0
        %524 = vmatprep.subr.bf16.mxu0 0
        %525 = vmatpush1.bf16.msra.mxu0 0
        %526 = vmatprep.subr.bf16.mxu0 0
        %527 = vmatpush1.bf16.msra.mxu0 0
        %528 = vmatprep.subr.bf16.mxu0 0
        %529 = vmatpush1.bf16.msra.mxu0 0
        %530 = vmatprep.subr.bf16.mxu0 0
        %531 = vmatpush1.bf16.msra.mxu0 0
        %532 = vmatprep.subr.bf16.mxu0 0
        %533 = vmatpush1.bf16.msra.mxu0 0
        %534 = vmatprep.subr.bf16.mxu0 0
        %535 = vmatpush1.bf16.msra.mxu0 %v519
        %536 = vmatprep.subr.bf16.mxu0 0
        %537 = vmatpush2.bf16.msra.mxu0 0
        %538 = vmatprep.subr.bf16.mxu0 0
        %539 = vmatpush2.bf16.msra.mxu0 0
        %540 = vmatprep.subr.bf16.mxu0 0
        %541 = vmatpush2.bf16.msra.mxu0 0
        %542 = vmatprep.subr.bf16.mxu0 0
        %543 = vmatpush2.bf16.msra.mxu0 0
        %544 = vmatprep.subr.bf16.mxu0 0
        %545 = vmatpush2.bf16.msra.mxu0 0
        %546 = vmatprep.subr.bf16.mxu0 0
        %547 = vmatpush2.bf16.msra.mxu0 0
        %548 = vmatprep.subr.bf16.mxu0 0
        %549 = vmatpush2.bf16.msra.mxu0 0
        %550 = vmatprep.subr.bf16.mxu0 0
        %551 = vmatpush2.bf16.msra.mxu0 0
        %552 = vmatprep.mubr.bf16.mxu0 0
        %553 = vmatmul.mubr.bf16.gmra.mxu0 %v439
        %v554 = vpop.f32.mrf.mxu0
        %v555 = vadd.f32 %v410, %v554
        %v556 = vpop.f32.mrf.mxu0
        %v557 = vpop.f32.mrf.mxu0
        %v558 = vadd.f32 %v415, %v557
        %v559 = vpop.f32.mrf.mxu0
        %560 = vmatprep.mubr.bf16.mxu0 0
        %561 = vmatmul.mubr.bf16.gmra.mxu0 %v442
        %v562 = vpop.f32.mrf.mxu0
        %v563 = vadd.f32 %v420, %v562
        %v564 = vpop.f32.mrf.mxu0
        %v565 = vpop.f32.mrf.mxu0
        %v566 = vadd.f32 %v425, %v565
        %v567 = vpop.f32.mrf.mxu0
        %568 = vdwg.mxu0
        %vm569 = vcmp.gt.f32.partialorder %v555, 0.0
        %vm570 = vcmp.gt.f32.partialorder %v558, 0.0
        %vm571 = vcmp.gt.f32.partialorder %v563, 0.0
        %vm572 = vcmp.gt.f32.partialorder %v566, 0.0
        %v573 = vmin.f32 %v555, 0.0
        %v574 = vmin.f32 %v558, 0.0
        %v575 = vmin.f32 %v563, 0.0
        %v576 = vmin.f32 %v566, 0.0
        %v577 = vmul.f32 %v573, 1.442695
        %v578 = vpow.pop %v577
        %v579 = vmul.f32 %v574, 1.442695
        %v580 = vpow.pop %v579
        %v581 = vmul.f32 %v575, 1.442695
        %v582 = vpow.pop %v581
        %v583 = vmul.f32 %v576, 1.442695
        %v584 = vpow.pop %v583
        %v585 = vsub.f32 %v578, 1.0
        %v586 = vsub.f32 %v580, 1.0
        %v587 = vsub.f32 %v582, 1.0
        %v588 = vsub.f32 %v584, 1.0
        %v589 = vsel %vm569, %v555, %v585
        %v590 = vsel %vm570, %v558, %v586
        %v591 = vsel %vm571, %v563, %v587
        %v592 = vsel %vm572, %v566, %v588
        %vm593 = vcmask 31744
        %v594 = vsel %vm593, %v589, 0.0
        %v595 = vsel %vm593, %v590, 0.0
        %v596 = vsel %vm593, %v591, 0.0
        %v597 = vsel %vm593, %v592, 0.0
        %v598 = vlaneseq
        %v599 = vand.u32 %v598, 127
        %vm600 = vcmp.lt.s32.totalorder %v599, 2
        %601 = vrot.lane.b32.xlu0 %v513, 2
        %v602 = vpop.permute.xlu0 %601
        %603 = vrot.lane.b32.xlu0 %v514, 2
        %v604 = vpop.permute.xlu0 %603
        %605 = vrot.lane.b32.xlu0 %v515, 2
        %v606 = vpop.permute.xlu0 %605
        %607 = vrot.lane.b32.xlu0 %v516, 2
        %v608 = vpop.permute.xlu0 %607
        %v609 = vsel %vm600, %v594, %v602
        %v610 = vsel %vm600, %v595, %v604
        %v611 = vsel %vm600, %v596, %v606
        %v612 = vsel %vm600, %v597, %v608
        %v613 = vpack.c.bf16 %v610, %v609
        %v614 = vpack.c.bf16 %v612, %v611
        %v617 = vunpack.c.l.b16 %v613
        %v618 = vunpack.c.h.b16 %v613
        %v619 = vunpack.c.l.b16 %v614
        %v620 = vunpack.c.h.b16 %v614
        %v621 = vpack.c.b16 %v617, %v617
        %v622 = vpack.c.b16 %v618, %v618
        %v623 = vpack.c.b16 %v619, %v619
        %v624 = vpack.c.b16 %v620, %v620
        %629 = vst [vmem:[#allocation2] sm:$0xf] %v621
        %630 = vst [vmem:[#allocation2 + $0x4] sm:$0xf] %v622
        %631 = vst [vmem:[#allocation2 + $0x8] sm:$0xf] %v623
        %632 = vst [vmem:[#allocation2 + $0xc] sm:$0xf] %v624
        %vm633 = vcmp.lt.s32.totalorder %v599, 1
        %634 = vrot.lane.b32.xlu0 %v594, 127
        %v635 = vpop.permute.xlu0 %634
        %636 = vrot.lane.b32.xlu0 %v595, 127
        %v637 = vpop.permute.xlu0 %636
        %638 = vrot.lane.b32.xlu0 %v596, 127
        %v639 = vpop.permute.xlu0 %638
        %640 = vrot.lane.b32.xlu0 %v597, 127
        %v641 = vpop.permute.xlu0 %640
        %642 = vrot.lane.b32.xlu0 %v513, 1
        %v643 = vpop.permute.xlu0 %642
        %644 = vrot.lane.b32.xlu0 %v514, 1
        %v645 = vpop.permute.xlu0 %644
        %646 = vrot.lane.b32.xlu0 %v515, 1
        %v647 = vpop.permute.xlu0 %646
        %648 = vrot.lane.b32.xlu0 %v516, 1
        %v649 = vpop.permute.xlu0 %648
        %v650 = vsel %vm633, %v635, %v643
        %v651 = vsel %vm633, %v637, %v645
        %v652 = vsel %vm633, %v639, %v647
        %v653 = vsel %vm633, %v641, %v649
        %v654 = vpack.c.bf16 %v651, %v650
        %v655 = vpack.c.bf16 %v653, %v652
        %v658 = vunpack.c.l.b16 %v654
        %v659 = vunpack.c.h.b16 %v654
        %v660 = vunpack.c.l.b16 %v655
        %v661 = vunpack.c.h.b16 %v655
        %v662 = vpack.c.b16 %v658, %v658
        %v663 = vpack.c.b16 %v659, %v659
        %v664 = vpack.c.b16 %v660, %v660
        %v665 = vpack.c.b16 %v661, %v661
        %670 = vst [vmem:[#allocation2 + $0x10] sm:$0xf] %v662
        %671 = vst [vmem:[#allocation2 + $0x14] sm:$0xf] %v663
        %672 = vst [vmem:[#allocation2 + $0x18] sm:$0xf] %v664
        %673 = vst [vmem:[#allocation2 + $0x1c] sm:$0xf] %v665
        %v674 = vpack.c.bf16 %v514, %v513
        %v675 = vpack.c.bf16 %v516, %v515
        %v678 = vunpack.c.l.b16 %v674
        %v679 = vunpack.c.h.b16 %v674
        %v680 = vunpack.c.l.b16 %v675
        %v681 = vunpack.c.h.b16 %v675
        %v682 = vpack.c.b16 %v678, %v678
        %v683 = vpack.c.b16 %v679, %v679
        %v684 = vpack.c.b16 %v680, %v680
        %v685 = vpack.c.b16 %v681, %v681
        %690 = vst [vmem:[#allocation2 + $0x20] sm:$0xf] %v682
        %691 = vst [vmem:[#allocation2 + $0x24] sm:$0xf] %v683
        %692 = vst [vmem:[#allocation2 + $0x28] sm:$0xf] %v684
        %693 = vst [vmem:[#allocation2 + $0x2c] sm:$0xf] %v685
        %vm694 = vcmp.ge.s32.totalorder %v599, 127
        %695 = vrot.lane.b32.xlu0 %v594, 125
        %v696 = vpop.permute.xlu0 %695
        %697 = vrot.lane.b32.xlu0 %v595, 125
        %v698 = vpop.permute.xlu0 %697
        %699 = vrot.lane.b32.xlu0 %v596, 125
        %v700 = vpop.permute.xlu0 %699
        %701 = vrot.lane.b32.xlu0 %v597, 125
        %v702 = vpop.permute.xlu0 %701
        %703 = vrot.lane.b32.xlu0 %v513, 127
        %v704 = vpop.permute.xlu0 %703
        %705 = vrot.lane.b32.xlu0 %v514, 127
        %v706 = vpop.permute.xlu0 %705
        %707 = vrot.lane.b32.xlu0 %v515, 127
        %v708 = vpop.permute.xlu0 %707
        %709 = vrot.lane.b32.xlu0 %v516, 127
        %v710 = vpop.permute.xlu0 %709
        %v711 = vsel %vm694, %v696, %v704
        %v712 = vsel %vm694, %v698, %v706
        %v713 = vsel %vm694, %v700, %v708
        %v714 = vsel %vm694, %v702, %v710
        %v715 = vpack.c.bf16 %v712, %v711
        %v716 = vpack.c.bf16 %v714, %v713
        %v719 = vunpack.c.l.b16 %v715
        %v720 = vunpack.c.h.b16 %v715
        %v721 = vunpack.c.l.b16 %v716
        %v722 = vunpack.c.h.b16 %v716
        %v723 = vpack.c.b16 %v719, %v719
        %v724 = vpack.c.b16 %v720, %v720
        %v725 = vpack.c.b16 %v721, %v721
        %v726 = vpack.c.b16 %v722, %v722
        %731 = vst [vmem:[#allocation2 + $0x30] sm:$0xf] %v723
        %732 = vst [vmem:[#allocation2 + $0x34] sm:$0xf] %v724
        %733 = vst [vmem:[#allocation2 + $0x38] sm:$0xf] %v725
        %734 = vst [vmem:[#allocation2 + $0x3c] sm:$0xf] %v726
        %vm735 = vcmp.ge.s32.totalorder %v599, 126
        %736 = vrot.lane.b32.xlu0 %v594, 124
        %v737 = vpop.permute.xlu0 %736
        %738 = vrot.lane.b32.xlu0 %v595, 124
        %v739 = vpop.permute.xlu0 %738
        %740 = vrot.lane.b32.xlu0 %v596, 124
        %v741 = vpop.permute.xlu0 %740
        %742 = vrot.lane.b32.xlu0 %v597, 124
        %v743 = vpop.permute.xlu0 %742
        %744 = vrot.lane.b32.xlu0 %v513, 126
        %v745 = vpop.permute.xlu0 %744
        %746 = vrot.lane.b32.xlu0 %v514, 126
        %v747 = vpop.permute.xlu0 %746
        %748 = vrot.lane.b32.xlu0 %v515, 126
        %v749 = vpop.permute.xlu0 %748
        %750 = vrot.lane.b32.xlu0 %v516, 126
        %v751 = vpop.permute.xlu0 %750
        %v752 = vsel %vm735, %v737, %v745
        %v753 = vsel %vm735, %v739, %v747
        %v754 = vsel %vm735, %v741, %v749
        %v755 = vsel %vm735, %v743, %v751
        %v756 = vpack.c.bf16 %v753, %v752
        %v757 = vpack.c.bf16 %v755, %v754
        %v760 = vunpack.c.l.b16 %v756
        %v761 = vunpack.c.h.b16 %v756
        %v762 = vunpack.c.l.b16 %v757
        %v763 = vunpack.c.h.b16 %v757
        %v764 = vpack.c.b16 %v760, %v760
        %v765 = vpack.c.b16 %v761, %v761
        %v766 = vpack.c.b16 %v762, %v762
        %v767 = vpack.c.b16 %v763, %v763
        %772 = vst [vmem:[#allocation2 + $0x40] sm:$0xf] %v764
        %773 = vst [vmem:[#allocation2 + $0x44] sm:$0xf] %v765
        %774 = vst [vmem:[#allocation2 + $0x48] sm:$0xf] %v766
        %775 = vst [vmem:[#allocation2 + $0x4c] sm:$0xf] %v767
        %v776 = vld [vmem:[%s4] sm:$0xff]
        %v777 = vld [vmem:[%s4 + $0x8] sm:$0xff]
        %v778 = vld [vmem:[%s4 + $0x10] sm:$0xff]
        %v779 = vld [vmem:[%s4 + $0x18] sm:$0xff]
        %v780 = vld [vmem:[#allocation2] sm:$0xf]
        %v781 = vld [vmem:[#allocation2 + $0x4] sm:$0xf]
        %v782 = vld [vmem:[#allocation2 + $0x8] sm:$0xf]
        %v783 = vld [vmem:[#allocation2 + $0xc] sm:$0xf]
        %v784 = vld [vmem:[#allocation2 + $0x10] sm:$0xf]
        %v785 = vld [vmem:[#allocation2 + $0x14] sm:$0xf]
        %v786 = vld [vmem:[#allocation2 + $0x18] sm:$0xf]
        %v787 = vld [vmem:[#allocation2 + $0x1c] sm:$0xf]
        %v788 = vld [vmem:[#allocation2 + $0x20] sm:$0xf]
        %v789 = vld [vmem:[#allocation2 + $0x24] sm:$0xf]
        %v790 = vld [vmem:[#allocation2 + $0x28] sm:$0xf]
        %v791 = vld [vmem:[#allocation2 + $0x2c] sm:$0xf]
        %v792 = vld [vmem:[#allocation2 + $0x30] sm:$0xf]
        %v793 = vld [vmem:[#allocation2 + $0x34] sm:$0xf]
        %v794 = vld [vmem:[#allocation2 + $0x38] sm:$0xf]
        %v795 = vld [vmem:[#allocation2 + $0x3c] sm:$0xf]
        %v796 = vld [vmem:[#allocation2 + $0x40] sm:$0xf]
        %v797 = vld [vmem:[#allocation2 + $0x44] sm:$0xf]
        %v798 = vld [vmem:[#allocation2 + $0x48] sm:$0xf]
        %v799 = vld [vmem:[#allocation2 + $0x4c] sm:$0xf]
        %v800 = vld [vmem:[%s5] sm:$0xff]
        %v801 = vld [vmem:[%s5 + $0x8] sm:$0xff]
        %v802 = vld [vmem:[%s5 + $0x10] sm:$0xff]
        %v803 = vld [vmem:[%s5 + $0x18] sm:$0xff]
        %805 = vset.pattern.permute.xlu0 0
        %806 = vperm.xlu0 %805, %v800
        %v807 = vpop.permute.xlu0 %806
        %810 = vset.pattern.permute.xlu0 0
        %811 = vperm.xlu0 %810, %v801
        %v812 = vpop.permute.xlu0 %811
        %815 = vset.pattern.permute.xlu0 0
        %816 = vperm.xlu0 %815, %v802
        %v817 = vpop.permute.xlu0 %816
        %820 = vset.pattern.permute.xlu0 0
        %821 = vperm.xlu0 %820, %v803
        %v822 = vpop.permute.xlu0 %821
        %v828 = vunpack.c.l.b16 %v776
        %v829 = vunpack.c.h.b16 %v776
        %v830 = vunpack.c.l.b16 %v777
        %v831 = vunpack.c.h.b16 %v777
        %v832 = vunpack.c.l.b16 %v778
        %v833 = vunpack.c.h.b16 %v778
        %v834 = vunpack.c.l.b16 %v779
        %v835 = vunpack.c.h.b16 %v779
        %v836 = vpack.c.b16 %v830, %v828
        %v837 = vpack.c.b16 %v831, %v829
        %v838 = vpack.c.b16 %v834, %v832
        %v839 = vpack.c.b16 %v835, %v833
        %v862 = vunpack.c.l.b16 %v780
        %v863 = vunpack.c.l.b16 %v781
        %v864 = vunpack.c.l.b16 %v782
        %v865 = vunpack.c.l.b16 %v783
        %v866 = vunpack.c.l.b16 %v784
        %v867 = vunpack.c.l.b16 %v785
        %v868 = vunpack.c.l.b16 %v786
        %v869 = vunpack.c.l.b16 %v787
        %v870 = vunpack.c.l.b16 %v788
        %v871 = vunpack.c.l.b16 %v789
        %v872 = vunpack.c.l.b16 %v790
        %v873 = vunpack.c.l.b16 %v791
        %v874 = vunpack.c.l.b16 %v792
        %v875 = vunpack.c.l.b16 %v793
        %v876 = vunpack.c.l.b16 %v794
        %v877 = vunpack.c.l.b16 %v795
        %v878 = vunpack.c.l.b16 %v796
        %v879 = vunpack.c.l.b16 %v797
        %v880 = vunpack.c.l.b16 %v798
        %v881 = vunpack.c.l.b16 %v799
        %v882 = vpack.c.b16 %v863, %v862
        %v883 = vpack.c.b16 %v865, %v864
        %v884 = vpack.c.b16 %v867, %v866
        %v885 = vpack.c.b16 %v869, %v868
        %v886 = vpack.c.b16 %v871, %v870
        %v887 = vpack.c.b16 %v873, %v872
        %v888 = vpack.c.b16 %v875, %v874
        %v889 = vpack.c.b16 %v877, %v876
        %v890 = vpack.c.b16 %v879, %v878
        %v891 = vpack.c.b16 %v881, %v880
        %vm902 = vcmask 261120
        %v904 = vsel %vm902, %v837, 0
        %v907 = vsel %vm902, %v839, 0
        %909 = vmatprep.subr.bf16.mxu0 0
        %910 = vmatpush1.bf16.msra.mxu0 %v889
        %911 = vmatprep.subr.bf16.mxu0 0
        %912 = vmatpush1.bf16.msra.mxu0 %v888
        %913 = vmatprep.subr.bf16.mxu0 0
        %914 = vmatpush1.bf16.msra.mxu0 %v887
        %915 = vmatprep.subr.bf16.mxu0 0
        %916 = vmatpush1.bf16.msra.mxu0 %v886
        %917 = vmatprep.subr.bf16.mxu0 0
        %918 = vmatpush1.bf16.msra.mxu0 %v885
        %919 = vmatprep.subr.bf16.mxu0 0
        %920 = vmatpush1.bf16.msra.mxu0 %v884
        %921 = vmatprep.subr.bf16.mxu0 0
        %922 = vmatpush1.bf16.msra.mxu0 %v883
        %923 = vmatprep.subr.bf16.mxu0 0
        %924 = vmatpush1.bf16.msra.mxu0 %v882
        %925 = vmatprep.subr.bf16.mxu0 0
        %926 = vmatpush2.bf16.msra.mxu0 0
        %927 = vmatprep.subr.bf16.mxu0 0
        %928 = vmatpush2.bf16.msra.mxu0 0
        %929 = vmatprep.subr.bf16.mxu0 0
        %930 = vmatpush2.bf16.msra.mxu0 0
        %931 = vmatprep.subr.bf16.mxu0 0
        %932 = vmatpush2.bf16.msra.mxu0 0
        %933 = vmatprep.subr.bf16.mxu0 0
        %934 = vmatpush2.bf16.msra.mxu0 0
        %935 = vmatprep.subr.bf16.mxu0 0
        %936 = vmatpush2.bf16.msra.mxu0 0
        %937 = vmatprep.subr.bf16.mxu0 0
        %938 = vmatpush2.bf16.msra.mxu0 %v891
        %939 = vmatprep.subr.bf16.mxu0 0
        %940 = vmatpush2.bf16.msra.mxu0 %v890
        %941 = vmatprep.mubr.bf16.mxu0 %v904
        %942 = vmatmul.mubr.bf16.gmra.mxu0 %v836
        %v943 = vpop.f32.mrf.mxu0
        %v944 = vadd.f32 %v807, %v943
        %v945 = vpop.f32.mrf.mxu0
        %v946 = vpop.f32.mrf.mxu0
        %v947 = vadd.f32 %v812, %v946
        %v948 = vpop.f32.mrf.mxu0
        %949 = vmatprep.mubr.bf16.mxu0 %v907
        %950 = vmatmul.mubr.bf16.gmra.mxu0 %v838
        %v951 = vpop.f32.mrf.mxu0
        %v952 = vadd.f32 %v817, %v951
        %v953 = vpop.f32.mrf.mxu0
        %v954 = vpop.f32.mrf.mxu0
        %v955 = vadd.f32 %v822, %v954
        %v956 = vpop.f32.mrf.mxu0
        %957 = vdwg.mxu0
        %vm958 = vcmp.gt.f32.partialorder %v944, 0.0
        %vm959 = vcmp.gt.f32.partialorder %v947, 0.0
        %vm960 = vcmp.gt.f32.partialorder %v952, 0.0
        %vm961 = vcmp.gt.f32.partialorder %v955, 0.0
        %v962 = vmin.f32 %v944, 0.0
        %v963 = vmin.f32 %v947, 0.0
        %v964 = vmin.f32 %v952, 0.0
        %v965 = vmin.f32 %v955, 0.0
        %v966 = vmul.f32 %v962, 1.442695
        %v967 = vpow.pop %v966
        %v968 = vmul.f32 %v963, 1.442695
        %v969 = vpow.pop %v968
        %v970 = vmul.f32 %v964, 1.442695
        %v971 = vpow.pop %v970
        %v972 = vmul.f32 %v965, 1.442695
        %v973 = vpow.pop %v972
        %v974 = vsub.f32 %v967, 1.0
        %v975 = vsub.f32 %v969, 1.0
        %v976 = vsub.f32 %v971, 1.0
        %v977 = vsub.f32 %v973, 1.0
        %v978 = vsel %vm958, %v944, %v974
        %v979 = vsel %vm959, %v947, %v975
        %v980 = vsel %vm960, %v952, %v976
        %v981 = vsel %vm961, %v955, %v977
        %v982 = vpack.c.bf16 %v979, %v978
        %v983 = vpack.c.bf16 %v981, %v980
        %v984 = vld [vmem:[%s6] sm:$0xf]
        %v985 = vld [vmem:[%s6 + $0x4] sm:$0xf]
        %v986 = vld [vmem:[%s6 + $0x8] sm:$0xf]
        %v987 = vld [vmem:[%s6 + $0xc] sm:$0xf]
        %v988 = vld [vmem:[%s7] sm:$0xff]
        %v989 = vld [vmem:[%s7 + $0x8] sm:$0xff]
        %v990 = vld [vmem:[%s7 + $0x10] sm:$0xff]
        %v991 = vld [vmem:[%s7 + $0x18] sm:$0xff]
        %993 = vset.pattern.permute.xlu0 0
        %994 = vperm.xlu0 %993, %v988
        %v995 = vpop.permute.xlu0 %994
        %998 = vset.pattern.permute.xlu0 0
        %999 = vperm.xlu0 %998, %v989
        %v1000 = vpop.permute.xlu0 %999
        %1003 = vset.pattern.permute.xlu0 0
        %1004 = vperm.xlu0 %1003, %v990
        %v1005 = vpop.permute.xlu0 %1004
        %1008 = vset.pattern.permute.xlu0 0
        %1009 = vperm.xlu0 %1008, %v991
        %v1010 = vpop.permute.xlu0 %1009
        %v1016 = vunpack.c.l.b16 %v984
        %v1017 = vunpack.c.l.b16 %v985
        %v1018 = vunpack.c.l.b16 %v986
        %v1019 = vunpack.c.l.b16 %v987
        %v1020 = vpack.c.b16 %v1017, %v1016
        %v1021 = vpack.c.b16 %v1019, %v1018
        %v1023 = vsel %vm902, %v1020, 0
        %v1026 = vsel %vm902, %v1021, 0
        %1028 = vmatprep.subr.bf16.mxu0 0
        %1029 = vmatpush1.bf16.msra.mxu0 0
        %1030 = vmatprep.subr.bf16.mxu0 0
        %1031 = vmatpush1.bf16.msra.mxu0 0
        %1032 = vmatprep.subr.bf16.mxu0 0
        %1033 = vmatpush1.bf16.msra.mxu0 0
        %1034 = vmatprep.subr.bf16.mxu0 0
        %1035 = vmatpush1.bf16.msra.mxu0 0
        %1036 = vmatprep.subr.bf16.mxu0 0
        %1037 = vmatpush1.bf16.msra.mxu0 0
        %1038 = vmatprep.subr.bf16.mxu0 0
        %1039 = vmatpush1.bf16.msra.mxu0 0
        %1040 = vmatprep.subr.bf16.mxu0 0
        %1041 = vmatpush1.bf16.msra.mxu0 %v983
        %1042 = vmatprep.subr.bf16.mxu0 0
        %1043 = vmatpush1.bf16.msra.mxu0 %v982
        %1044 = vmatprep.subr.bf16.mxu0 0
        %1045 = vmatpush2.bf16.msra.mxu0 0
        %1046 = vmatprep.subr.bf16.mxu0 0
        %1047 = vmatpush2.bf16.msra.mxu0 0
        %1048 = vmatprep.subr.bf16.mxu0 0
        %1049 = vmatpush2.bf16.msra.mxu0 0
        %1050 = vmatprep.subr.bf16.mxu0 0
        %1051 = vmatpush2.bf16.msra.mxu0 0
        %1052 = vmatprep.subr.bf16.mxu0 0
        %1053 = vmatpush2.bf16.msra.mxu0 0
        %1054 = vmatprep.subr.bf16.mxu0 0
        %1055 = vmatpush2.bf16.msra.mxu0 0
        %1056 = vmatprep.subr.bf16.mxu0 0
        %1057 = vmatpush2.bf16.msra.mxu0 0
        %1058 = vmatprep.subr.bf16.mxu0 0
        %1059 = vmatpush2.bf16.msra.mxu0 0
        %1060 = vmatprep.mubr.bf16.mxu0 0
        %1061 = vmatmul.mubr.bf16.gmra.mxu0 %v1023
        %v1062 = vpop.f32.mrf.mxu0
        %v1063 = vadd.f32 %v995, %v1062
        %v1064 = vpop.f32.mrf.mxu0
        %v1065 = vpop.f32.mrf.mxu0
        %v1066 = vadd.f32 %v1000, %v1065
        %v1067 = vpop.f32.mrf.mxu0
        %1068 = vmatprep.mubr.bf16.mxu0 0
        %1069 = vmatmul.mubr.bf16.gmra.mxu0 %v1026
        %v1070 = vpop.f32.mrf.mxu0
        %v1071 = vadd.f32 %v1005, %v1070
        %v1072 = vpop.f32.mrf.mxu0
        %v1073 = vpop.f32.mrf.mxu0
        %v1074 = vadd.f32 %v1010, %v1073
        %v1075 = vpop.f32.mrf.mxu0
        %1076 = vdwg.mxu0
        %vm1077 = vcmp.gt.f32.partialorder %v1063, 0.0
        %vm1078 = vcmp.gt.f32.partialorder %v1066, 0.0
        %vm1079 = vcmp.gt.f32.partialorder %v1071, 0.0
        %vm1080 = vcmp.gt.f32.partialorder %v1074, 0.0
        %v1081 = vmin.f32 %v1063, 0.0
        %v1082 = vmin.f32 %v1066, 0.0
        %v1083 = vmin.f32 %v1071, 0.0
        %v1084 = vmin.f32 %v1074, 0.0
        %v1085 = vmul.f32 %v1081, 1.442695
        %v1086 = vpow.pop %v1085
        %v1087 = vmul.f32 %v1082, 1.442695
        %v1088 = vpow.pop %v1087
        %v1089 = vmul.f32 %v1083, 1.442695
        %v1090 = vpow.pop %v1089
        %v1091 = vmul.f32 %v1084, 1.442695
        %v1092 = vpow.pop %v1091
        %v1093 = vsub.f32 %v1086, 1.0
        %v1094 = vsub.f32 %v1088, 1.0
        %v1095 = vsub.f32 %v1090, 1.0
        %v1096 = vsub.f32 %v1092, 1.0
        %v1097 = vsel %vm1077, %v1063, %v1093
        %v1098 = vsel %vm1078, %v1066, %v1094
        %v1099 = vsel %vm1079, %v1071, %v1095
        %v1100 = vsel %vm1080, %v1074, %v1096
        %1101 = vst [vmem:[%s385] sm:$0xff] %v1097
        %1102 = vst [vmem:[%s385 + $0x8] sm:$0xff] %v1098
        %1103 = vst [vmem:[%s385 + $0x10] sm:$0xff] %v1099
        %1104 = vst [vmem:[%s385 + $0x18] sm:$0xff] %v1100
        %s1105 = sand.u32 %s226, 1
        %s1106 = scalar_lea.sflag [#allocation5], %s1105
        %s1107 = sand.u32 %s226, 1
        %s1108 = smul.addr %s1107, 32
        %s1109 = scalar_lea.vmem [#allocation4], %s1108
        // Predicated region
        $region91: #{zeroeggs_speech_encoder.1} parent=85 // pred_check
          %p1110 = pneg %p236
        $region92: #{zeroeggs_speech_encoder.1} parent=85 // pred_check_branch
          %1112 = sbr.rel (%p1110) target = $region94
        $region93: #{zeroeggs_speech_encoder.1} parent=85 // pred_region
          %s1114 = ssub.s32 512, 512
          %1115 = vsyncadd %s1106, %s1114
          %s1116 = smul.addr %s26, 12
          %s1117 = sadd.s32 %s27, %s1116
          %s1118 = smul.addr %s1117, 128
          %s1119 = scalar_lea.hbm %s8, %s1118
          %s1120 = sshll.u32 %s1109, 4
          %s1121 = int_to_ptr.vmem [resolvable:$true] %s1120
          %1126 = dma.vmem_to_hbm [thread:$0]  %s1121, 512, %s1119, %s1106, 128, 384, 8
        $region94: #{zeroeggs_speech_encoder.1} parent=85 // pred_fallthru
          _
      $region86: #{zeroeggs_speech_encoder.1} parent=5 // pred_fallthru
        _
      %p1127 = scmp.le.s32.totalorder 2, %s17
      // Predicated region
      $region95: #{zeroeggs_speech_encoder.1} parent=5 // pred_check
        %p1128 = pneg %p1127
      $region96: #{zeroeggs_speech_encoder.1} parent=5 // pred_check_branch
        %1130 = sbr.rel (%p1128) target = $region98
      $region97: #{zeroeggs_speech_encoder.1} parent=5 // pred_region
        %s1131 = ssub.s32 %s17, 2
        // Predicated region
        $region99: #{zeroeggs_speech_encoder.1} parent=97 // pred_check
          %p1132 = pneg %p242
        $region100: #{zeroeggs_speech_encoder.1} parent=97 // pred_check_branch
          %1134 = sbr.rel (%p1132) target = $region102
        $region101: #{zeroeggs_speech_encoder.1} parent=97 // pred_region
          %s1135 = sand.u32 %s227, 1
          %s1136 = scalar_lea.sflag [#allocation5], %s1135
          %s1137 = sand.u32 %s227, 1
          %s1138 = smul.addr %s1137, 32
          %s1139 = scalar_lea.vmem [#allocation4], %s1138
          %1140 = dma.done %s1136, 512
        $region102: #{zeroeggs_speech_encoder.1} parent=97 // pred_fallthru
          _
      $region98: #{zeroeggs_speech_encoder.1} parent=5 // pred_fallthru
        _
    $region6: #{zeroeggs_speech_encoder.1} parent=1 // loop_footer
      %s21 = sadd.s32 1, %s17
    $region7: #{zeroeggs_speech_encoder.1} parent=1 // loop_footer_branch
      %16 = sbr.rel target = $region3
    $region8: #{zeroeggs_speech_encoder.1} parent=1 // loop_exit
      _
    %1141 = vsyncpa [#allocation5], 1
    %s1142 = scalar_lea.sflag [#allocation5], 1
    %1143 = vsyncpa %s1142, 1

</llo_original>
